<compile_context>
chip_gen: v7x
topology: tpu7x:2x2x1
jax: 0.10.0
libtpu: 0.0.40
codegen_flags: <defaults>
</compile_context>

<pallas_src>
import math

import jax
import jax.numpy as jnp
import numpy as np
from jax.experimental import pallas as pl
from jax.experimental.pallas import tpu as pltpu


# -----------------------------------------------------------------------------
# Kernel
# -----------------------------------------------------------------------------
def batch_executor_kernel(
    b2_ref,                                        # SMEM (3,) f32 score biases
    hid_ref, ls_ref, lop_ref, pid_ref,             # activations
    W_hs_ref, W_lsbig_ref, b_lsbig_ref, w2row_ref, # fused attention weights
    W_lop_ref, b_ih_ref, W_ctxbd_ref,              # fused GRU weights
    Wc1_ref, bc1_ref, Wc2_ref, bc2_ref,            # fused classifier weights
    out_ref,                                       # packed (B, out_w) output
):
    B, S, H = hid_ref.shape
    O = lop_ref.shape[1]
    H3 = 3 * H

    hid = hid_ref[...]                  # (B, S, H)
    ls = ls_ref[...]                    # (B, H)
    lop = lop_ref[...]                  # (B, O)
    pid = pid_ref[...]                  # (B, 1) int32

    # ---- last_state-driven matmuls, all fused: [att_ls(3H) | GRU_hh(9H)] ----
    ls_big = jnp.dot(ls, W_lsbig_ref[...],
                     preferred_element_type=jnp.float32) + b_lsbig_ref[...]
    ls_pre = ls_big[:, :H3]             # (B, 3H) attention pre-act (b1 folded in)
    gh_all = ls_big[:, H3:]             # (B, 9H) GRU hidden gates, gate-major

    # ---- attention first layer over hidden_states, 3 heads fused (N = 3H) ----
    hs2 = hid.reshape(B * S, H)
    hid_pre = jnp.dot(hs2, W_hs_ref[...],
                      preferred_element_type=jnp.float32)          # (B*S, 3H)
    a1 = jnp.tanh(hid_pre.reshape(B, S, H3) + ls_pre[:, None, :])  # (B, S, 3H)

    # ---- score projection off the MXU: elementwise mul + lane reduce ----
    prod = a1 * w2row_ref[...][None]                               # (B, S, 3H)

    attns = []
    ctxs = []
    for k in range(3):                  # unrolled; cheap VPU/XLU/EUP work only
        s_k = jnp.sum(prod[:, :, k * H:(k + 1) * H], axis=-1) + b2_ref[k]  # (B,S)
        m = jnp.max(s_k, axis=1, keepdims=True)
        e = jnp.exp(s_k - m)
        attn_k = e / jnp.sum(e, axis=1, keepdims=True)             # softmax(seq)
        attns.append(attn_k)
        ctxs.append(jnp.sum(hid * attn_k[:, :, None], axis=1))     # (B, H)
    ctx_all = jnp.concatenate(ctxs, axis=-1)                       # (B, 3H)

    # ---- GRU input gates, all heads fused (gate-major layout) ----
    gi_all = (jnp.dot(lop, W_lop_ref[...], preferred_element_type=jnp.float32)
              + jnp.dot(ctx_all, W_ctxbd_ref[...],
                        preferred_element_type=jnp.float32)
              + b_ih_ref[...])                                     # (B, 9H)

    r_all = jax.nn.sigmoid(gi_all[:, :H3] + gh_all[:, :H3])
    z_all = jax.nn.sigmoid(gi_all[:, H3:2 * H3] + gh_all[:, H3:2 * H3])
    n_all = jnp.tanh(gi_all[:, 2 * H3:] + r_all * gh_all[:, 2 * H3:])
    ls_rep = jnp.concatenate([ls, ls, ls], axis=-1)                # (B, 3H)
    h_all = (1.0 - z_all) * n_all + z_all * ls_rep                 # (B, 3H)

    # ---- per-example selection by param_id ----
    is1 = pid == 1
    is2 = pid == 2
    is3 = pid == 3
    cur = jnp.where(is1, h_all[:, :H],
          jnp.where(is2, h_all[:, H:2 * H],
          jnp.where(is3, h_all[:, 2 * H:], ls)))                   # (B, H)
    attn_out = jnp.where(is1, attns[0],
               jnp.where(is2, attns[1],
               jnp.where(is3, attns[2], jnp.ones_like(attns[0])))) # (B, S)

    # ---- classifiers: fused first layer (N = 4H), block-diag second layer ----
    h1 = jnp.maximum(
        jnp.dot(cur, Wc1_ref[...], preferred_element_type=jnp.float32)
        + bc1_ref[...], 0.0)                                       # (B, 4H)
    fused2 = (jnp.dot(h1, Wc2_ref[...], preferred_element_type=jnp.float32)
              + bc2_ref[...])                                      # (B, O+3H)
    # fused2 layout: [operation(O) | attribute(H) | relational(H) | action(H)]

    # ---- single lane-dense packed store ----
    pad = out_ref.shape[1] - (H + (O + 3 * H) + S)
    pieces = [cur, fused2, attn_out]
    if pad > 0:
        pieces.append(jnp.zeros((B, pad), jnp.float32))
    out_ref[...] = jnp.concatenate(pieces, axis=-1)


# -----------------------------------------------------------------------------
# Parameter init (PyTorch-style, stored (in, out)) and weight fusion
# -----------------------------------------------------------------------------
def init_params(key, hidden_dim, nr_operations):
    H, O = hidden_dim, nr_operations
    keys = iter(jax.random.split(key, 64))

    def lin(fan_in, fan_out):
        k1, k2 = jax.random.split(next(keys))
        bound = 1.0 / math.sqrt(fan_in)
        W = jax.random.uniform(k1, (fan_in, fan_out), jnp.float32, -bound, bound)
        b = jax.random.uniform(k2, (1, fan_out), jnp.float32, -bound, bound)
        return W, b

    p = {}
    attW1, attb1, attW2, attb2 = [], [], [], []
    for _ in range(3):
        W, b = lin(2 * H, H); attW1.append(W); attb1.append(b)
        W, b = lin(H, 1);     attW2.append(W); attb2.append(b)
    p['attW1'] = jnp.stack(attW1)          # (3, 2H, H)
    p['attb1'] = jnp.stack(attb1)          # (3, 1, H)
    p['attW2'] = jnp.stack(attW2)          # (3, H, 1)
    p['attb2'] = jnp.stack(attb2)          # (3, 1, 1)

    gWih, gWhh, gbih, gbhh = [], [], [], []
    bound = 1.0 / math.sqrt(H)
    for _ in range(3):
        k1, k2, k3, k4 = jax.random.split(next(keys), 4)
        gWih.append(jax.random.uniform(k1, (O + H, 3 * H), jnp.float32, -bound, bound))
        gWhh.append(jax.random.uniform(k2, (H, 3 * H), jnp.float32, -bound, bound))
        gbih.append(jax.random.uniform(k3, (1, 3 * H), jnp.float32, -bound, bound))
        gbhh.append(jax.random.uniform(k4, (1, 3 * H), jnp.float32, -bound, bound))
    p['gWih'] = jnp.stack(gWih)            # (3, O+H, 3H)
    p['gWhh'] = jnp.stack(gWhh)            # (3, H, 3H)
    p['gbih'] = jnp.stack(gbih)            # (3, 1, 3H)
    p['gbhh'] = jnp.stack(gbhh)            # (3, 1, 3H)

    # heads stacked in order: [concept_attention, relational_concept_attention,
    #                          action_concept_attention]
    hW1, hb1, hW2, hb2 = [], [], [], []
    for _ in range(3):
        W, b = lin(H, H); hW1.append(W); hb1.append(b)
        W, b = lin(H, H); hW2.append(W); hb2.append(b)
    p['hW1'] = jnp.stack(hW1); p['hb1'] = jnp.stack(hb1)
    p['hW2'] = jnp.stack(hW2); p['hb2'] = jnp.stack(hb2)

    p['oW1'], p['ob1'] = lin(H, H)
    p['oW2'], p['ob2'] = lin(H, O)
    return p


def prepare_fused_params(p):
    """Stack/pack weights into lane-dense fused matrices (do once at load time)."""
    H = p['oW1'].shape[0]
    O = p['oW2'].shape[1]
    zeros = lambda r, c: jnp.zeros((r, c), jnp.float32)
    f = {}

    # --- attention heads ---
    W_ls_att = jnp.concatenate([p['attW1'][k][:H] for k in range(3)], axis=1)  # (H,3H)
    W_hs_att = jnp.concatenate([p['attW1'][k][H:] for k in range(3)], axis=1)  # (H,3H)
    b1_att = jnp.concatenate([p['attb1'][k] for k in range(3)], axis=1)        # (1,3H)
    f['w2_row'] = jnp.concatenate([p['attW2'][k].T for k in range(3)], axis=1) # (1,3H)
    f['b2'] = p['attb2'].reshape(3)                                            # (3,)

    # --- GRU, gate-major fused layout [r1 r2 r3 | z1 z2 z3 | n1 n2 n3] ---
    def gate_major(stack):   # stack: (3, R, 3H) -> (R, 9H)
        return jnp.concatenate(
            [stack[k][:, g * H:(g + 1) * H] for g in range(3) for k in range(3)],
            axis=1)

    W_hh = gate_major(p['gWhh'])                       # (H, 9H)
    b_hh = gate_major(p['gbhh'])                       # (1, 9H)
    f['W_lop'] = gate_major(p['gWih'][:, :O, :])       # (O, 9H)
    f['b_ih'] = gate_major(p['gbih'])                  # (1, 9H)

    # block-diagonal context weight: head k rows hit only head-k gate columns
    blocks = []
    for k in range(3):
        row = jnp.concatenate(
            [jnp.concatenate(
                [zeros(H, k * H),
                 p['gWih'][k][O:, g * H:(g + 1) * H],
                 zeros(H, (2 - k) * H)], axis=1)
             for g in range(3)], axis=1)               # (H, 9H)
        blocks.append(row)
    f['W_ctx_bd'] = jnp.concatenate(blocks, axis=0)    # (3H, 9H)

    # --- last_state-driven fused matmul: [attention ls-part | GRU hh] ---
    f['W_ls_big'] = jnp.concatenate([W_ls_att, W_hh], axis=1)   # (H, 12H)
    f['b_ls_big'] = jnp.concatenate([b1_att, b_hh], axis=1)     # (1, 12H)
    f['W_hs_att'] = W_hs_att

    # --- classifiers: fused first layer + block-diag second layer ---
    f['Wc1'] = jnp.concatenate(
        [p['oW1'], p['hW1'][0], p['hW1'][1], p['hW1'][2]], axis=1)   # (H, 4H)
    f['bc1'] = jnp.concatenate(
        [p['ob1'], p['hb1'][0], p['hb1'][1], p['hb1'][2]], axis=1)   # (1, 4H)
    rows = [jnp.concatenate([p['oW2'], zeros(H, 3 * H)], axis=1)]
    for k in range(3):
        rows.append(jnp.concatenate(
            [zeros(H, O + k * H), p['hW2'][k], zeros(H, (2 - k) * H)], axis=1))
    f['Wc2_bd'] = jnp.concatenate(rows, axis=0)                      # (4H, O+3H)
    f['bc2'] = jnp.concatenate(
        [p['ob2'], p['hb2'][0], p['hb2'][1], p['hb2'][2]], axis=1)   # (1, O+3H)
    return f


# -----------------------------------------------------------------------------
# Wrapper
# -----------------------------------------------------------------------------
def batch_executor_forward(hidden_states, last_state, last_operation, param_id,
                           params, fused=None):
    if fused is None:
        fused = prepare_fused_params(params)
    B, S, H = hidden_states.shape
    O = params['oW2'].shape[1]
    if last_operation.ndim == 1:
        last_operation = jax.nn.one_hot(last_operation, O, dtype=jnp.float32)
    pid = param_id.astype(jnp.int32).reshape(B, 1)

    width = 4 * H + O + S                       # cur | oper attr rel act | attn
    out_w = max(128, ((width + 127) // 128) * 128)   # lane-dense padded output

    args = (fused['b2'],
            hidden_states.astype(jnp.float32), last_state.astype(jnp.float32),
            last_operation.astype(jnp.float32), pid,
            fused['W_hs_att'], fused['W_ls_big'], fused['b_ls_big'],
            fused['w2_row'],
            fused['W_lop'], fused['b_ih'], fused['W_ctx_bd'],
            fused['Wc1'], fused['bc1'], fused['Wc2_bd'], fused['bc2'])

    vmem = pl.BlockSpec(memory_space=pltpu.MemorySpace.VMEM)
    smem = pl.BlockSpec(memory_space=pltpu.MemorySpace.SMEM)
    in_specs = [smem] + [vmem] * (len(args) - 1)

    flops = 2 * (B * S * H * 3 * H + B * H * 12 * H + B * O * 9 * H
                 + B * 3 * H * 9 * H + B * H * 4 * H + B * 4 * H * (O + 3 * H))
    transcendentals = B * S * 3 * H + 6 * B * S + 3 * B * 3 * H
    bytes_accessed = 4 * (sum(int(np.prod(a.shape)) for a in args) + B * out_w)

    packed = pl.pallas_call(
        batch_executor_kernel,
        out_shape=jax.ShapeDtypeStruct((B, out_w), jnp.float32),
        in_specs=in_specs,
        out_specs=pl.BlockSpec(memory_space=pltpu.MemorySpace.VMEM),
        cost_estimate=pl.CostEstimate(flops=flops,
                                      transcendentals=transcendentals,
                                      bytes_accessed=bytes_accessed),
    )(*args)

    cur = packed[:, :H]
    oper = packed[:, H:H + O]
    attr = packed[:, H + O:2 * H + O]
    rel = packed[:, 2 * H + O:3 * H + O]
    act = packed[:, 3 * H + O:4 * H + O]
    attn = packed[:, 4 * H + O:4 * H + O + S]
    return dict(current_state=cur, operation=oper, attribute_concept=attr,
                relational_concept=rel, action_concept=act, attentions=attn)


# -----------------------------------------------------------------------------
# Pure-JAX reference (mirrors the PyTorch forward, eval mode)
# -----------------------------------------------------------------------------
def reference_forward(hidden_states, last_state, last_operation, param_id, p):
    B, S, H = hidden_states.shape
    O = p['oW2'].shape[1]
    if last_operation.ndim == 1:
        last_operation = jax.nn.one_hot(last_operation, O, dtype=jnp.float32)
    pid = param_id.astype(jnp.int32).reshape(B, 1)

    states, attns = [], []
    for k in range(3):
        cat = jnp.concatenate(
            [jnp.broadcast_to(last_state[:, None, :], hidden_states.shape),
             hidden_states], axis=-1)
        a1 = jnp.tanh(cat @ p['attW1'][k] + p['attb1'][k])
        scores = (a1 @ p['attW2'][k] + p['attb2'][k])[..., 0]
        attn = jax.nn.softmax(scores, axis=1)
        ctx = jnp.einsum('bsh,bs->bh', hidden_states, attn)
        x = jnp.concatenate([last_operation, ctx], axis=-1)
        gi = x @ p['gWih'][k] + p['gbih'][k]
        gh = last_state @ p['gWhh'][k] + p['gbhh'][k]
        r = jax.nn.sigmoid(gi[:, :H] + gh[:, :H])
        z = jax.nn.sigmoid(gi[:, H:2 * H] + gh[:, H:2 * H])
        n = jnp.tanh(gi[:, 2 * H:] + r * gh[:, 2 * H:])
        states.append((1.0 - z) * n + z * last_state)
        attns.append(attn)

    cur = jnp.where(pid == 1, states[0], jnp.where(pid == 2, states[1],
          jnp.where(pid == 3, states[2], last_state)))
    attn = jnp.where(pid == 1, attns[0], jnp.where(pid == 2, attns[1],
           jnp.where(pid == 3, attns[2], jnp.ones_like(attns[0]))))
    oper = jnp.maximum(cur @ p['oW1'] + p['ob1'], 0.0) @ p['oW2'] + p['ob2']
    heads = [jnp.maximum(cur @ p['hW1'][k] + p['hb1'][k], 0.0) @ p['hW2'][k] + p['hb2'][k]
             for k in range(3)]
    return dict(current_state=cur, operation=oper, attribute_concept=heads[0],
                relational_concept=heads[1], action_concept=heads[2], attentions=attn)


if __name__ == "__main__":
    B, S, H, O = 2, 8, 32, 8          # batch, seq, hidden_dim, nr_operations
    root = jax.random.PRNGKey(0)
    k_par, k_hid, k_ls, k_op, k_pid = jax.random.split(root, 5)

    params = init_params(k_par, H, O)
    fused = prepare_fused_params(params)      # one-time weight packing

    hidden_states = jax.random.normal(k_hid, (B, S, H), jnp.float32)
    last_state = jax.random.normal(k_ls, (B, H), jnp.float32)
    last_operation = jax.random.randint(k_op, (B,), 0, O)   # 1-D -> one-hot in glue
    param_id = jnp.array([1, 2], dtype=jnp.int32)           # mixed param ids

    out = batch_executor_forward(hidden_states, last_state, last_operation,
                                 param_id, params, fused)
    jax.block_until_ready(out)

    ref = reference_forward(hidden_states, last_state, last_operation,
                            param_id, params)
    for name in out:
        np.testing.assert_allclose(np.asarray(out[name]), np.asarray(ref[name]),
                                   rtol=1e-4, atol=1e-4)

    print("KERNEL_OK")
</pallas_src>

<mosaic_0001>
module attributes {stable_mosaic.version = 11 : i64} {
  func.func @batch_executor_kernel(%arg0: memref<3xf32, #tpu.memory_space<smem>>, %arg1: memref<2x8x32xf32, #tpu.memory_space<vmem>>, %arg2: memref<2x32xf32, #tpu.memory_space<vmem>>, %arg3: memref<2x8xf32, #tpu.memory_space<vmem>>, %arg4: memref<2x1xi32, #tpu.memory_space<vmem>>, %arg5: memref<32x96xf32, #tpu.memory_space<vmem>>, %arg6: memref<32x384xf32, #tpu.memory_space<vmem>>, %arg7: memref<1x384xf32, #tpu.memory_space<vmem>>, %arg8: memref<1x96xf32, #tpu.memory_space<vmem>>, %arg9: memref<8x288xf32, #tpu.memory_space<vmem>>, %arg10: memref<1x288xf32, #tpu.memory_space<vmem>>, %arg11: memref<96x288xf32, #tpu.memory_space<vmem>>, %arg12: memref<32x128xf32, #tpu.memory_space<vmem>>, %arg13: memref<1x128xf32, #tpu.memory_space<vmem>>, %arg14: memref<128x104xf32, #tpu.memory_space<vmem>>, %arg15: memref<1x104xf32, #tpu.memory_space<vmem>>, %arg16: memref<2x256xf32, #tpu.memory_space<vmem>>) attributes {dimension_semantics = [], scalar_prefetch = 0 : i64, scratch_operands = 0 : i64, tpu.core_type = #tpu.core_type<tc>} {
    %c0 = arith.constant 0 : index
    %c0_0 = arith.constant 0 : index
    %c0_1 = arith.constant 0 : index
    %0 = vector.load %arg1[%c0, %c0_0, %c0_1] : memref<2x8x32xf32, #tpu.memory_space<vmem>>, vector<2x8x32xf32>
    %c0_2 = arith.constant 0 : index
    %c0_3 = arith.constant 0 : index
    %1 = vector.load %arg2[%c0_2, %c0_3] : memref<2x32xf32, #tpu.memory_space<vmem>>, vector<2x32xf32>
    %c0_4 = arith.constant 0 : index
    %c0_5 = arith.constant 0 : index
    %2 = vector.load %arg3[%c0_4, %c0_5] : memref<2x8xf32, #tpu.memory_space<vmem>>, vector<2x8xf32>
    %c0_6 = arith.constant 0 : index
    %c0_7 = arith.constant 0 : index
    %3 = vector.load %arg4[%c0_6, %c0_7] : memref<2x1xi32, #tpu.memory_space<vmem>>, vector<2x1xi32>
    %c0_8 = arith.constant 0 : index
    %c0_9 = arith.constant 0 : index
    %4 = vector.load %arg6[%c0_8, %c0_9] : memref<32x384xf32, #tpu.memory_space<vmem>>, vector<32x384xf32>
    %cst = arith.constant dense<0.000000e+00> : vector<2x384xf32>
    %5 = tpu.matmul %1, %4, %cst {dimension_numbers = #tpu.dot_dimension_numbers<[1], [0], [0], [1], [0, 0, 1, 1], [], []>} : vector<2x32xf32>, vector<32x384xf32>, vector<2x384xf32> -> vector<2x384xf32>
    %c0_10 = arith.constant 0 : index
    %c0_11 = arith.constant 0 : index
    %6 = vector.load %arg7[%c0_10, %c0_11] : memref<1x384xf32, #tpu.memory_space<vmem>>, vector<1x384xf32>
    %7 = vector.broadcast %6 : vector<1x384xf32> to vector<2x384xf32>
    %8 = arith.addf %5, %7 : vector<2x384xf32>
    %9 = vector.extract_strided_slice %8 {offsets = [0, 0], sizes = [2, 96], strides = [1, 1]} : vector<2x384xf32> to vector<2x96xf32>
    %10 = vector.extract_strided_slice %8 {offsets = [0, 96], sizes = [2, 288], strides = [1, 1]} : vector<2x384xf32> to vector<2x288xf32>
    %11 = vector.shape_cast %0 : vector<2x8x32xf32> to vector<16x32xf32>
    %c0_12 = arith.constant 0 : index
    %c0_13 = arith.constant 0 : index
    %12 = vector.load %arg5[%c0_12, %c0_13] : memref<32x96xf32, #tpu.memory_space<vmem>>, vector<32x96xf32>
    %cst_14 = arith.constant dense<0.000000e+00> : vector<16x96xf32>
    %13 = tpu.matmul %11, %12, %cst_14 {dimension_numbers = #tpu.dot_dimension_numbers<[1], [0], [0], [1], [0, 0, 1, 1], [], []>} : vector<16x32xf32>, vector<32x96xf32>, vector<16x96xf32> -> vector<16x96xf32>
    %14 = vector.shape_cast %13 : vector<16x96xf32> to vector<2x8x96xf32>
    %15 = vector.shape_cast %9 : vector<2x96xf32> to vector<2x1x96xf32>
    %16 = vector.broadcast %15 : vector<2x1x96xf32> to vector<2x8x96xf32>
    %17 = arith.addf %14, %16 : vector<2x8x96xf32>
    %18 = math.tanh %17 : vector<2x8x96xf32>
    %c0_15 = arith.constant 0 : index
    %c0_16 = arith.constant 0 : index
    %19 = vector.load %arg8[%c0_15, %c0_16] : memref<1x96xf32, #tpu.memory_space<vmem>>, vector<1x96xf32>
    %20 = vector.shape_cast %19 : vector<1x96xf32> to vector<1x1x96xf32>
    %21 = vector.broadcast %20 : vector<1x1x96xf32> to vector<2x8x96xf32>
    %22 = arith.mulf %18, %21 : vector<2x8x96xf32>
    %23 = vector.extract_strided_slice %22 {offsets = [0, 0, 0], sizes = [2, 8, 32], strides = [1, 1, 1]} : vector<2x8x96xf32> to vector<2x8x32xf32>
    %cst_17 = arith.constant dense<0.000000e+00> : vector<2x8xf32>
    %24 = vector.multi_reduction <add>, %23, %cst_17 [2] : vector<2x8x32xf32> to vector<2x8xf32>
    %c0_18 = arith.constant 0 : index
    %25 = memref.load %arg0[%c0_18] : memref<3xf32, #tpu.memory_space<smem>>
    %26 = vector.broadcast %25 : f32 to vector<2x8xf32>
    %27 = arith.addf %24, %26 : vector<2x8xf32>
    %cst_19 = arith.constant dense<0xFF800000> : vector<2xf32>
    %28 = vector.multi_reduction <maximumf>, %27, %cst_19 [1] : vector<2x8xf32> to vector<2xf32>
    %29 = vector.shape_cast %28 : vector<2xf32> to vector<2x1xf32>
    %30 = vector.broadcast %29 : vector<2x1xf32> to vector<2x8xf32>
    %31 = arith.subf %27, %30 : vector<2x8xf32>
    %32 = math.exp %31 : vector<2x8xf32>
    %cst_20 = arith.constant dense<0.000000e+00> : vector<2xf32>
    %33 = vector.multi_reduction <add>, %32, %cst_20 [1] : vector<2x8xf32> to vector<2xf32>
    %34 = vector.shape_cast %33 : vector<2xf32> to vector<2x1xf32>
    %35 = vector.broadcast %34 : vector<2x1xf32> to vector<2x8xf32>
    %36 = arith.divf %32, %35 : vector<2x8xf32>
    %37 = vector.shape_cast %36 : vector<2x8xf32> to vector<2x8x1xf32>
    %38 = vector.broadcast %37 : vector<2x8x1xf32> to vector<2x8x32xf32>
    %39 = arith.mulf %0, %38 : vector<2x8x32xf32>
    %cst_21 = arith.constant dense<0.000000e+00> : vector<2x32xf32>
    %40 = vector.multi_reduction <add>, %39, %cst_21 [1] : vector<2x8x32xf32> to vector<2x32xf32>
    %41 = vector.extract_strided_slice %22 {offsets = [0, 0, 32], sizes = [2, 8, 32], strides = [1, 1, 1]} : vector<2x8x96xf32> to vector<2x8x32xf32>
    %cst_22 = arith.constant dense<0.000000e+00> : vector<2x8xf32>
    %42 = vector.multi_reduction <add>, %41, %cst_22 [2] : vector<2x8x32xf32> to vector<2x8xf32>
    %c1 = arith.constant 1 : index
    %43 = memref.load %arg0[%c1] : memref<3xf32, #tpu.memory_space<smem>>
    %44 = vector.broadcast %43 : f32 to vector<2x8xf32>
    %45 = arith.addf %42, %44 : vector<2x8xf32>
    %cst_23 = arith.constant dense<0xFF800000> : vector<2xf32>
    %46 = vector.multi_reduction <maximumf>, %45, %cst_23 [1] : vector<2x8xf32> to vector<2xf32>
    %47 = vector.shape_cast %46 : vector<2xf32> to vector<2x1xf32>
    %48 = vector.broadcast %47 : vector<2x1xf32> to vector<2x8xf32>
    %49 = arith.subf %45, %48 : vector<2x8xf32>
    %50 = math.exp %49 : vector<2x8xf32>
    %cst_24 = arith.constant dense<0.000000e+00> : vector<2xf32>
    %51 = vector.multi_reduction <add>, %50, %cst_24 [1] : vector<2x8xf32> to vector<2xf32>
    %52 = vector.shape_cast %51 : vector<2xf32> to vector<2x1xf32>
    %53 = vector.broadcast %52 : vector<2x1xf32> to vector<2x8xf32>
    %54 = arith.divf %50, %53 : vector<2x8xf32>
    %55 = vector.shape_cast %54 : vector<2x8xf32> to vector<2x8x1xf32>
    %56 = vector.broadcast %55 : vector<2x8x1xf32> to vector<2x8x32xf32>
    %57 = arith.mulf %0, %56 : vector<2x8x32xf32>
    %cst_25 = arith.constant dense<0.000000e+00> : vector<2x32xf32>
    %58 = vector.multi_reduction <add>, %57, %cst_25 [1] : vector<2x8x32xf32> to vector<2x32xf32>
    %59 = vector.extract_strided_slice %22 {offsets = [0, 0, 64], sizes = [2, 8, 32], strides = [1, 1, 1]} : vector<2x8x96xf32> to vector<2x8x32xf32>
    %cst_26 = arith.constant dense<0.000000e+00> : vector<2x8xf32>
    %60 = vector.multi_reduction <add>, %59, %cst_26 [2] : vector<2x8x32xf32> to vector<2x8xf32>
    %c2 = arith.constant 2 : index
    %61 = memref.load %arg0[%c2] : memref<3xf32, #tpu.memory_space<smem>>
    %62 = vector.broadcast %61 : f32 to vector<2x8xf32>
    %63 = arith.addf %60, %62 : vector<2x8xf32>
    %cst_27 = arith.constant dense<0xFF800000> : vector<2xf32>
    %64 = vector.multi_reduction <maximumf>, %63, %cst_27 [1] : vector<2x8xf32> to vector<2xf32>
    %65 = vector.shape_cast %64 : vector<2xf32> to vector<2x1xf32>
    %66 = vector.broadcast %65 : vector<2x1xf32> to vector<2x8xf32>
    %67 = arith.subf %63, %66 : vector<2x8xf32>
    %68 = math.exp %67 : vector<2x8xf32>
    %cst_28 = arith.constant dense<0.000000e+00> : vector<2xf32>
    %69 = vector.multi_reduction <add>, %68, %cst_28 [1] : vector<2x8xf32> to vector<2xf32>
    %70 = vector.shape_cast %69 : vector<2xf32> to vector<2x1xf32>
    %71 = vector.broadcast %70 : vector<2x1xf32> to vector<2x8xf32>
    %72 = arith.divf %68, %71 : vector<2x8xf32>
    %73 = vector.shape_cast %72 : vector<2x8xf32> to vector<2x8x1xf32>
    %74 = vector.broadcast %73 : vector<2x8x1xf32> to vector<2x8x32xf32>
    %75 = arith.mulf %0, %74 : vector<2x8x32xf32>
    %cst_29 = arith.constant dense<0.000000e+00> : vector<2x32xf32>
    %76 = vector.multi_reduction <add>, %75, %cst_29 [1] : vector<2x8x32xf32> to vector<2x32xf32>
    %77 = tpu.concatenate %40, %58, %76 in 1 : vector<2x32xf32>, vector<2x32xf32>, vector<2x32xf32> -> vector<2x96xf32>
    %c0_30 = arith.constant 0 : index
    %c0_31 = arith.constant 0 : index
    %78 = vector.load %arg9[%c0_30, %c0_31] : memref<8x288xf32, #tpu.memory_space<vmem>>, vector<8x288xf32>
    %cst_32 = arith.constant dense<0.000000e+00> : vector<2x288xf32>
    %79 = tpu.matmul %2, %78, %cst_32 {dimension_numbers = #tpu.dot_dimension_numbers<[1], [0], [0], [1], [0, 0, 1, 1], [], []>} : vector<2x8xf32>, vector<8x288xf32>, vector<2x288xf32> -> vector<2x288xf32>
    %c0_33 = arith.constant 0 : index
    %c0_34 = arith.constant 0 : index
    %80 = vector.load %arg11[%c0_33, %c0_34] : memref<96x288xf32, #tpu.memory_space<vmem>>, vector<96x288xf32>
    %cst_35 = arith.constant dense<0.000000e+00> : vector<2x288xf32>
    %81 = tpu.matmul %77, %80, %cst_35 {dimension_numbers = #tpu.dot_dimension_numbers<[1], [0], [0], [1], [0, 0, 1, 1], [], []>} : vector<2x96xf32>, vector<96x288xf32>, vector<2x288xf32> -> vector<2x288xf32>
    %82 = arith.addf %79, %81 : vector<2x288xf32>
    %c0_36 = arith.constant 0 : index
    %c0_37 = arith.constant 0 : index
    %83 = vector.load %arg10[%c0_36, %c0_37] : memref<1x288xf32, #tpu.memory_space<vmem>>, vector<1x288xf32>
    %84 = vector.broadcast %83 : vector<1x288xf32> to vector<2x288xf32>
    %85 = arith.addf %82, %84 : vector<2x288xf32>
    %86 = vector.extract_strided_slice %85 {offsets = [0, 0], sizes = [2, 96], strides = [1, 1]} : vector<2x288xf32> to vector<2x96xf32>
    %87 = vector.extract_strided_slice %10 {offsets = [0, 0], sizes = [2, 96], strides = [1, 1]} : vector<2x288xf32> to vector<2x96xf32>
    %88 = arith.addf %86, %87 : vector<2x96xf32>
    %89 = arith.negf %88 : vector<2x96xf32>
    %90 = math.exp %89 : vector<2x96xf32>
    %cst_38 = arith.constant 1.000000e+00 : f32
    %91 = vector.broadcast %cst_38 : f32 to vector<2x96xf32>
    %92 = arith.addf %91, %90 : vector<2x96xf32>
    %93 = arith.divf %91, %92 : vector<2x96xf32>
    %94 = vector.extract_strided_slice %85 {offsets = [0, 96], sizes = [2, 96], strides = [1, 1]} : vector<2x288xf32> to vector<2x96xf32>
    %95 = vector.extract_strided_slice %10 {offsets = [0, 96], sizes = [2, 96], strides = [1, 1]} : vector<2x288xf32> to vector<2x96xf32>
    %96 = arith.addf %94, %95 : vector<2x96xf32>
    %97 = arith.negf %96 : vector<2x96xf32>
    %98 = math.exp %97 : vector<2x96xf32>
    %cst_39 = arith.constant 1.000000e+00 : f32
    %99 = vector.broadcast %cst_39 : f32 to vector<2x96xf32>
    %100 = arith.addf %99, %98 : vector<2x96xf32>
    %101 = arith.divf %99, %100 : vector<2x96xf32>
    %102 = vector.extract_strided_slice %85 {offsets = [0, 192], sizes = [2, 96], strides = [1, 1]} : vector<2x288xf32> to vector<2x96xf32>
    %103 = vector.extract_strided_slice %10 {offsets = [0, 192], sizes = [2, 96], strides = [1, 1]} : vector<2x288xf32> to vector<2x96xf32>
    %104 = arith.mulf %93, %103 : vector<2x96xf32>
    %105 = arith.addf %102, %104 : vector<2x96xf32>
    %106 = math.tanh %105 : vector<2x96xf32>
    %107 = tpu.concatenate %1, %1, %1 in 1 : vector<2x32xf32>, vector<2x32xf32>, vector<2x32xf32> -> vector<2x96xf32>
    %cst_40 = arith.constant 1.000000e+00 : f32
    %108 = vector.broadcast %cst_40 : f32 to vector<2x96xf32>
    %109 = arith.subf %108, %101 : vector<2x96xf32>
    %110 = arith.mulf %109, %106 : vector<2x96xf32>
    %111 = arith.mulf %101, %107 : vector<2x96xf32>
    %112 = arith.addf %110, %111 : vector<2x96xf32>
    %c1_i32 = arith.constant 1 : i32
    %113 = vector.broadcast %c1_i32 : i32 to vector<2x1xi32>
    %114 = arith.cmpi eq, %3, %113 : vector<2x1xi32>
    %c2_i32 = arith.constant 2 : i32
    %115 = vector.broadcast %c2_i32 : i32 to vector<2x1xi32>
    %116 = arith.cmpi eq, %3, %115 : vector<2x1xi32>
    %c3_i32 = arith.constant 3 : i32
    %117 = vector.broadcast %c3_i32 : i32 to vector<2x1xi32>
    %118 = arith.cmpi eq, %3, %117 : vector<2x1xi32>
    %119 = vector.extract_strided_slice %112 {offsets = [0, 0], sizes = [2, 32], strides = [1, 1]} : vector<2x96xf32> to vector<2x32xf32>
    %120 = vector.extract_strided_slice %112 {offsets = [0, 32], sizes = [2, 32], strides = [1, 1]} : vector<2x96xf32> to vector<2x32xf32>
    %121 = vector.extract_strided_slice %112 {offsets = [0, 64], sizes = [2, 32], strides = [1, 1]} : vector<2x96xf32> to vector<2x32xf32>
    %122 = vector.shape_cast %118 : vector<2x1xi1> to vector<2x1xi1>
    %123 = vector.broadcast %122 : vector<2x1xi1> to vector<2x32xi1>
    %124 = arith.select %123, %121, %1 : vector<2x32xi1>, vector<2x32xf32>
    %125 = vector.shape_cast %116 : vector<2x1xi1> to vector<2x1xi1>
    %126 = vector.broadcast %125 : vector<2x1xi1> to vector<2x32xi1>
    %127 = arith.select %126, %120, %124 : vector<2x32xi1>, vector<2x32xf32>
    %128 = vector.shape_cast %114 : vector<2x1xi1> to vector<2x1xi1>
    %129 = vector.broadcast %128 : vector<2x1xi1> to vector<2x32xi1>
    %130 = arith.select %129, %119, %127 : vector<2x32xi1>, vector<2x32xf32>
    %cst_41 = arith.constant 1.000000e+00 : f32
    %131 = vector.broadcast %cst_41 : f32 to vector<2x8xf32>
    %132 = vector.shape_cast %118 : vector<2x1xi1> to vector<2x1xi1>
    %133 = vector.broadcast %132 : vector<2x1xi1> to vector<2x8xi1>
    %134 = arith.select %133, %72, %131 : vector<2x8xi1>, vector<2x8xf32>
    %135 = vector.shape_cast %116 : vector<2x1xi1> to vector<2x1xi1>
    %136 = vector.broadcast %135 : vector<2x1xi1> to vector<2x8xi1>
    %137 = arith.select %136, %54, %134 : vector<2x8xi1>, vector<2x8xf32>
    %138 = vector.shape_cast %114 : vector<2x1xi1> to vector<2x1xi1>
    %139 = vector.broadcast %138 : vector<2x1xi1> to vector<2x8xi1>
    %140 = arith.select %139, %36, %137 : vector<2x8xi1>, vector<2x8xf32>
    %c0_42 = arith.constant 0 : index
    %c0_43 = arith.constant 0 : index
    %141 = vector.load %arg12[%c0_42, %c0_43] : memref<32x128xf32, #tpu.memory_space<vmem>>, vector<32x128xf32>
    %cst_44 = arith.constant dense<0.000000e+00> : vector<2x128xf32>
    %142 = tpu.matmul %130, %141, %cst_44 {dimension_numbers = #tpu.dot_dimension_numbers<[1], [0], [0], [1], [0, 0, 1, 1], [], []>} : vector<2x32xf32>, vector<32x128xf32>, vector<2x128xf32> -> vector<2x128xf32>
    %c0_45 = arith.constant 0 : index
    %c0_46 = arith.constant 0 : index
    %143 = vector.load %arg13[%c0_45, %c0_46] : memref<1x128xf32, #tpu.memory_space<vmem>>, vector<1x128xf32>
    %144 = vector.broadcast %143 : vector<1x128xf32> to vector<2x128xf32>
    %145 = arith.addf %142, %144 : vector<2x128xf32>
    %cst_47 = arith.constant 0.000000e+00 : f32
    %146 = vector.broadcast %cst_47 : f32 to vector<2x128xf32>
    %147 = arith.maximumf %145, %146 : vector<2x128xf32>
    %c0_48 = arith.constant 0 : index
    %c0_49 = arith.constant 0 : index
    %148 = vector.load %arg14[%c0_48, %c0_49] : memref<128x104xf32, #tpu.memory_space<vmem>>, vector<128x104xf32>
    %cst_50 = arith.constant dense<0.000000e+00> : vector<2x104xf32>
    %149 = tpu.matmul %147, %148, %cst_50 {dimension_numbers = #tpu.dot_dimension_numbers<[1], [0], [0], [1], [0, 0, 1, 1], [], []>} : vector<2x128xf32>, vector<128x104xf32>, vector<2x104xf32> -> vector<2x104xf32>
    %c0_51 = arith.constant 0 : index
    %c0_52 = arith.constant 0 : index
    %150 = vector.load %arg15[%c0_51, %c0_52] : memref<1x104xf32, #tpu.memory_space<vmem>>, vector<1x104xf32>
    %151 = vector.broadcast %150 : vector<1x104xf32> to vector<2x104xf32>
    %152 = arith.addf %149, %151 : vector<2x104xf32>
    %cst_53 = arith.constant 0.000000e+00 : f32
    %153 = vector.broadcast %cst_53 : f32 to vector<2x112xf32>
    %154 = tpu.concatenate %130, %152, %140, %153 in 1 : vector<2x32xf32>, vector<2x104xf32>, vector<2x8xf32>, vector<2x112xf32> -> vector<2x256xf32>
    %c0_54 = arith.constant 0 : index
    %c0_55 = arith.constant 0 : index
    %155 = vector.load %arg16[%c0_54, %c0_55] : memref<2x256xf32, #tpu.memory_space<vmem>>, vector<2x256xf32>
    tpu.vector_store %arg16[%c0_54, %c0_55], %154 {strides = array<i32>} : memref<2x256xf32, #tpu.memory_space<vmem>>, vector<2x256xf32>,
    return
  }
}

</mosaic_0001>

<llo_original>
// kernel: tpu_custom_call.1
$region0: #{tpu_custom_call.1}
  #allocation0 [shape = 'u32[]', space=smem, size = 0x4, offset = 0x4, fixed_abs, tag = 'smem constant byte address 0x4 - core index']
  #allocation1 [shape = 'u32[144,128]{1,0:T(1,128)}', space=vmem, size = 0x12000, scoped, tag = 'internal scratch']
  %s0 = inlined_call_operand.vmem [shape: f32[3], index: 0, kind: input, shape index: {}]
  %s1 = inlined_call_operand.vmem [shape: f32[2,8,32], index: 1, kind: input, shape index: {}]
  %s2 = inlined_call_operand.vmem [shape: f32[2,32], index: 2, kind: input, shape index: {}]
  %s3 = inlined_call_operand.vmem [shape: f32[2,8], index: 3, kind: input, shape index: {}]
  %s4 = inlined_call_operand.vmem [shape: s32[2,1], index: 4, kind: input, shape index: {}]
  %s5 = inlined_call_operand.vmem [shape: f32[32,96], index: 5, kind: input, shape index: {}]
  %s6 = inlined_call_operand.vmem [shape: f32[32,384], index: 6, kind: input, shape index: {}]
  %s7 = inlined_call_operand.vmem [shape: f32[1,384], index: 7, kind: input, shape index: {}]
  %s8 = inlined_call_operand.vmem [shape: f32[1,96], index: 8, kind: input, shape index: {}]
  %s9 = inlined_call_operand.vmem [shape: f32[8,288], index: 9, kind: input, shape index: {}]
  %s10 = inlined_call_operand.vmem [shape: f32[1,288], index: 10, kind: input, shape index: {}]
  %s11 = inlined_call_operand.hbm [shape: f32[96,288], index: 11, kind: input, shape index: {}]
  %s12 = inlined_call_operand.vmem [shape: f32[32,128], index: 12, kind: input, shape index: {}]
  %s13 = inlined_call_operand.vmem [shape: f32[1,128], index: 13, kind: input, shape index: {}]
  %s14 = inlined_call_operand.vmem [shape: f32[128,104], index: 14, kind: input, shape index: {}]
  %s15 = inlined_call_operand.vmem [shape: f32[1,104], index: 15, kind: input, shape index: {}]
  %s16 = inlined_call_operand.hbm [shape: f32[2,256], index: 16, kind: output, shape index: {}]
  %s17 = sld [smem:[#allocation0]]
  $region82: #{tpu_custom_call.1} parent=0
    _
  %s19 = ssub.s32 1, %s17
  %s20 = scalar_select 0, %s19, %s17
  $region1: #{tpu_custom_call.1} parent=0
    #allocation2 [shape = 'u8[512]{0}', space=smem, size = 0x200, scoped, tag = 'input window, operand 0, single buffered']
    #allocation3 [shape = 's32[1]{0}', space=sflag, size = 0x4, scoped, tag = 'scoped memory for tpu_custom_call.1']
    #allocation4 [shape = 's32[1]{0}', space=sflag, size = 0x4, scoped, tag = 'scoped memory for tpu_custom_call.1']
    #allocation5 [shape = 's32[1]{0}', space=sflag, size = 0x4, scoped, tag = 'scoped memory for tpu_custom_call.1']
    #allocation6 [shape = 'u8[147456]{0}', space=vmem, size = 0x24000, scoped, tag = 'input window, operand 11, single buffered']
    #allocation7 [shape = 'u8[2048]{0}', space=vmem, size = 0x800, scoped, tag = 'output window, operand 0, single buffered']
    %21 = vsyncpa [#allocation5], 0
    %22 = vsyncpa [#allocation3], 0
    %23 = vsyncpa [#allocation4], 0
    // Predicated region
    $region2: #{tpu_custom_call.1} parent=1 // pred_check
      _
    $region3: #{tpu_custom_call.1} parent=1 // pred_check_branch
      %25 = sbr.rel (0) target = $region5
    $region4: #{tpu_custom_call.1} parent=1 // pred_region
      %s27 = ssub.s32 16, 16
      %28 = vsyncadd [#allocation5], %s27
      %s30 = sshll.u32 %s0, 4
      %s31 = int_to_ptr.vmem [resolvable:$true] %s30
      %33 = dma.vmem_to_smem %s31, 16, [#allocation2], [#allocation5]
    $region5: #{tpu_custom_call.1} parent=1 // pred_fallthru
      _
    // Predicated region
    $region6: #{tpu_custom_call.1} parent=1 // pred_check
      _
    $region7: #{tpu_custom_call.1} parent=1 // pred_check_branch
      %35 = sbr.rel (0) target = $region9
    $region8: #{tpu_custom_call.1} parent=1 // pred_region
      _
    $region9: #{tpu_custom_call.1} parent=1 // pred_fallthru
      _
    // Predicated region
    $region10: #{tpu_custom_call.1} parent=1 // pred_check
      _
    $region11: #{tpu_custom_call.1} parent=1 // pred_check_branch
      %37 = sbr.rel (0) target = $region13
    $region12: #{tpu_custom_call.1} parent=1 // pred_region
      _
    $region13: #{tpu_custom_call.1} parent=1 // pred_fallthru
      _
    // Predicated region
    $region14: #{tpu_custom_call.1} parent=1 // pred_check
      _
    $region15: #{tpu_custom_call.1} parent=1 // pred_check_branch
      %39 = sbr.rel (0) target = $region17
    $region16: #{tpu_custom_call.1} parent=1 // pred_region
      _
    $region17: #{tpu_custom_call.1} parent=1 // pred_fallthru
      _
    // Predicated region
    $region18: #{tpu_custom_call.1} parent=1 // pred_check
      _
    $region19: #{tpu_custom_call.1} parent=1 // pred_check_branch
      %41 = sbr.rel (0) target = $region21
    $region20: #{tpu_custom_call.1} parent=1 // pred_region
      _
    $region21: #{tpu_custom_call.1} parent=1 // pred_fallthru
      _
    // Predicated region
    $region22: #{tpu_custom_call.1} parent=1 // pred_check
      _
    $region23: #{tpu_custom_call.1} parent=1 // pred_check_branch
      %43 = sbr.rel (0) target = $region25
    $region24: #{tpu_custom_call.1} parent=1 // pred_region
      _
    $region25: #{tpu_custom_call.1} parent=1 // pred_fallthru
      _
    // Predicated region
    $region26: #{tpu_custom_call.1} parent=1 // pred_check
      _
    $region27: #{tpu_custom_call.1} parent=1 // pred_check_branch
      %45 = sbr.rel (0) target = $region29
    $region28: #{tpu_custom_call.1} parent=1 // pred_region
      _
    $region29: #{tpu_custom_call.1} parent=1 // pred_fallthru
      _
    // Predicated region
    $region30: #{tpu_custom_call.1} parent=1 // pred_check
      _
    $region31: #{tpu_custom_call.1} parent=1 // pred_check_branch
      %47 = sbr.rel (0) target = $region33
    $region32: #{tpu_custom_call.1} parent=1 // pred_region
      _
    $region33: #{tpu_custom_call.1} parent=1 // pred_fallthru
      _
    // Predicated region
    $region34: #{tpu_custom_call.1} parent=1 // pred_check
      _
    $region35: #{tpu_custom_call.1} parent=1 // pred_check_branch
      %49 = sbr.rel (0) target = $region37
    $region36: #{tpu_custom_call.1} parent=1 // pred_region
      _
    $region37: #{tpu_custom_call.1} parent=1 // pred_fallthru
      _
    // Predicated region
    $region38: #{tpu_custom_call.1} parent=1 // pred_check
      _
    $region39: #{tpu_custom_call.1} parent=1 // pred_check_branch
      %51 = sbr.rel (0) target = $region41
    $region40: #{tpu_custom_call.1} parent=1 // pred_region
      _
    $region41: #{tpu_custom_call.1} parent=1 // pred_fallthru
      _
    // Predicated region
    $region42: #{tpu_custom_call.1} parent=1 // pred_check
      _
    $region43: #{tpu_custom_call.1} parent=1 // pred_check_branch
      %53 = sbr.rel (0) target = $region45
    $region44: #{tpu_custom_call.1} parent=1 // pred_region
      _
    $region45: #{tpu_custom_call.1} parent=1 // pred_fallthru
      _
    // Predicated region
    $region46: #{tpu_custom_call.1} parent=1 // pred_check
      _
    $region47: #{tpu_custom_call.1} parent=1 // pred_check_branch
      %55 = sbr.rel (0) target = $region49
    $region48: #{tpu_custom_call.1} parent=1 // pred_region
      %s57 = ssub.s32 4608, 4608
      %58 = vsyncadd [#allocation3], %s57
      %s59 = sshll.u32 [#allocation6], 4
      %s60 = int_to_ptr.vmem [resolvable:$true] %s59
      %65 = dma.hbm_to_vmem [thread:$0]  %s11, 4608, %s60, [#allocation3], 384, 384, 24
    $region49: #{tpu_custom_call.1} parent=1 // pred_fallthru
      _
    // Predicated region
    $region50: #{tpu_custom_call.1} parent=1 // pred_check
      _
    $region51: #{tpu_custom_call.1} parent=1 // pred_check_branch
      %67 = sbr.rel (0) target = $region53
    $region52: #{tpu_custom_call.1} parent=1 // pred_region
      _
    $region53: #{tpu_custom_call.1} parent=1 // pred_fallthru
      _
    // Predicated region
    $region54: #{tpu_custom_call.1} parent=1 // pred_check
      _
    $region55: #{tpu_custom_call.1} parent=1 // pred_check_branch
      %69 = sbr.rel (0) target = $region57
    $region56: #{tpu_custom_call.1} parent=1 // pred_region
      _
    $region57: #{tpu_custom_call.1} parent=1 // pred_fallthru
      _
    // Predicated region
    $region58: #{tpu_custom_call.1} parent=1 // pred_check
      _
    $region59: #{tpu_custom_call.1} parent=1 // pred_check_branch
      %71 = sbr.rel (0) target = $region61
    $region60: #{tpu_custom_call.1} parent=1 // pred_region
      _
    $region61: #{tpu_custom_call.1} parent=1 // pred_fallthru
      _
    // Predicated region
    $region62: #{tpu_custom_call.1} parent=1 // pred_check
      _
    $region63: #{tpu_custom_call.1} parent=1 // pred_check_branch
      %73 = sbr.rel (0) target = $region65
    $region64: #{tpu_custom_call.1} parent=1 // pred_region
      _
    $region65: #{tpu_custom_call.1} parent=1 // pred_fallthru
      _
    // Predicated region
    $region66: #{tpu_custom_call.1} parent=1 // pred_check
      _
    $region67: #{tpu_custom_call.1} parent=1 // pred_check_branch
      %75 = sbr.rel (0) target = $region69
    $region68: #{tpu_custom_call.1} parent=1 // pred_region
      %76 = dma.done [#allocation5], 16
    $region69: #{tpu_custom_call.1} parent=1 // pred_fallthru
      _
    // Predicated region
    $region70: #{tpu_custom_call.1} parent=1 // pred_check
      _
    $region71: #{tpu_custom_call.1} parent=1 // pred_check_branch
      %78 = sbr.rel (0) target = $region73
    $region72: #{tpu_custom_call.1} parent=1 // pred_region
      %79 = dma.done [#allocation3], 4608
    $region73: #{tpu_custom_call.1} parent=1 // pred_fallthru
      _
    %80 = sfence
    %v81 = vld [vmem:[%s1] sm:$0xff]
    %v82 = vld [vmem:[%s1 + $0x8] sm:$0xff]
    %v83 = vld [vmem:[%s2] sm:$0x3]
    %v84 = vld [vmem:[%s3] sm:$0x3]
    %v85 = vld [vmem:[%s4] sm:$0x3]
    %v86 = vld [vmem:[%s6] sm:$0xff]
    %v87 = vld [vmem:[%s6 + $0x8] sm:$0xff]
    %v88 = vld [vmem:[%s6 + $0x10] sm:$0xff]
    %v89 = vld [vmem:[%s6 + $0x18] sm:$0xff]
    %v90 = vld [vmem:[%s6 + $0x20] sm:$0xff]
    %v91 = vld [vmem:[%s6 + $0x28] sm:$0xff]
    %v92 = vld [vmem:[%s6 + $0x30] sm:$0xff]
    %v93 = vld [vmem:[%s6 + $0x38] sm:$0xff]
    %v94 = vld [vmem:[%s6 + $0x40] sm:$0xff]
    %v95 = vld [vmem:[%s6 + $0x48] sm:$0xff]
    %v96 = vld [vmem:[%s6 + $0x50] sm:$0xff]
    %v97 = vld [vmem:[%s6 + $0x58] sm:$0xff]
    %v98 = vld [vmem:[%s7] sm:$0x7]
    %v100 = vlaneseq
    %v101 = vshrl.u32 %v100, 7
    %v102 = vsub.s32 0, %v101
    %v103 = vrot.slane %v98, %v102
    %v104 = vlaneseq
    %v105 = vshrl.u32 %v104, 7
    %v106 = vsub.s32 1, %v105
    %v107 = vrot.slane %v98, %v106
    %v108 = vlaneseq
    %v109 = vshrl.u32 %v108, 7
    %v110 = vsub.s32 2, %v109
    %v111 = vrot.slane %v98, %v110
    %vm115 = vcmask 261120
    %v117 = vsel %vm115, %v83, 0
    %119 = vmatprep.subr.mxu0 %v87
    %120 = vmatpush1.msra.mxu0 %v86
    %121 = vmatprep.subr.mxu0 %v90
    %122 = vmatpush1.msra.mxu0 %v89
    %123 = vmatprep.subr.mxu0 %v93
    %124 = vmatpush1.msra.mxu0 %v92
    %125 = vmatprep.subr.mxu0 %v96
    %126 = vmatpush1.msra.mxu0 %v95
    %127 = vmatprep.subr.mxu0 0.0
    %128 = vmatpush1.msra.mxu0 0.0
    %129 = vmatprep.subr.mxu0 0.0
    %130 = vmatpush1.msra.mxu0 0.0
    %131 = vmatprep.subr.mxu0 0.0
    %132 = vmatpush1.msra.mxu0 0.0
    %133 = vmatprep.subr.mxu0 0.0
    %134 = vmatpush1.msra.mxu0 0.0
    %135 = vmatprep.subr.mxu0 0.0
    %136 = vmatpush1.msra.mxu0 0.0
    %137 = vmatprep.subr.mxu0 0.0
    %138 = vmatpush1.msra.mxu0 0.0
    %139 = vmatprep.subr.mxu0 0.0
    %140 = vmatpush1.msra.mxu0 0.0
    %141 = vmatprep.subr.mxu0 0.0
    %142 = vmatpush1.msra.mxu0 0.0
    %143 = vmatprep.subr.mxu0 0.0
    %144 = vmatpush1.msra.mxu0 0.0
    %145 = vmatprep.subr.mxu0 0.0
    %146 = vmatpush1.msra.mxu0 0.0
    %147 = vmatprep.subr.mxu0 0.0
    %148 = vmatpush1.msra.mxu0 0.0
    %149 = vmatprep.subr.mxu0 0.0
    %150 = vmatpush1.msra.mxu0 0.0
    %151 = vmatprep.subr.mxu0 0.0
    %152 = vmatpush1.msra.mxu0 0.0
    %153 = vmatprep.subr.mxu0 0.0
    %154 = vmatpush1.msra.mxu0 0.0
    %155 = vmatprep.subr.mxu0 0.0
    %156 = vmatpush1.msra.mxu0 0.0
    %157 = vmatprep.subr.mxu0 0.0
    %158 = vmatpush1.msra.mxu0 0.0
    %159 = vmatprep.subr.mxu0 0.0
    %160 = vmatpush1.msra.mxu0 0.0
    %161 = vmatprep.subr.mxu0 0.0
    %162 = vmatpush1.msra.mxu0 0.0
    %163 = vmatprep.subr.mxu0 0.0
    %164 = vmatpush1.msra.mxu0 0.0
    %165 = vmatprep.subr.mxu0 0.0
    %166 = vmatpush1.msra.mxu0 0.0
    %167 = vmatprep.subr.mxu0 0.0
    %168 = vmatpush1.msra.mxu0 0.0
    %169 = vmatprep.subr.mxu0 0.0
    %170 = vmatpush1.msra.mxu0 0.0
    %171 = vmatprep.subr.mxu0 0.0
    %172 = vmatpush1.msra.mxu0 0.0
    %173 = vmatprep.subr.mxu0 0.0
    %174 = vmatpush1.msra.mxu0 0.0
    %175 = vmatprep.subr.mxu0 0.0
    %176 = vmatpush1.msra.mxu0 0.0
    %177 = vmatprep.subr.mxu0 0.0
    %178 = vmatpush1.msra.mxu0 0.0
    %179 = vmatprep.subr.mxu0 0.0
    %180 = vmatpush1.msra.mxu0 0.0
    %181 = vmatprep.subr.mxu0 0.0
    %182 = vmatpush1.msra.mxu0 0.0
    %183 = vmatprep.mubr.f32.mxu0 0.0
    %184 = vmatmul.mubr.f32.gmra.mrb[0].mxu0 %v117
    %v185 = vpop.f32.mrb[0].mxu0
    %v186 = vadd.f32 %v103, %v185
    %v187 = vpop.f32.mrb[0].mxu0
    %v188 = vadd.f32 %v107, %v187
    %189 = vdwg.mxu0
    %190 = vmatprep.subr.mxu0 0.0
    %191 = vmatpush1.msra.mxu0 %v88
    %192 = vmatprep.subr.mxu0 0.0
    %193 = vmatpush1.msra.mxu0 %v91
    %194 = vmatprep.subr.mxu0 0.0
    %195 = vmatpush1.msra.mxu0 %v94
    %196 = vmatprep.subr.mxu0 0.0
    %197 = vmatpush1.msra.mxu0 %v97
    %198 = vmatprep.subr.mxu0 0.0
    %199 = vmatpush1.msra.mxu0 0.0
    %200 = vmatprep.subr.mxu0 0.0
    %201 = vmatpush1.msra.mxu0 0.0
    %202 = vmatprep.subr.mxu0 0.0
    %203 = vmatpush1.msra.mxu0 0.0
    %204 = vmatprep.subr.mxu0 0.0
    %205 = vmatpush1.msra.mxu0 0.0
    %206 = vmatprep.subr.mxu0 0.0
    %207 = vmatpush1.msra.mxu0 0.0
    %208 = vmatprep.subr.mxu0 0.0
    %209 = vmatpush1.msra.mxu0 0.0
    %210 = vmatprep.subr.mxu0 0.0
    %211 = vmatpush1.msra.mxu0 0.0
    %212 = vmatprep.subr.mxu0 0.0
    %213 = vmatpush1.msra.mxu0 0.0
    %214 = vmatprep.subr.mxu0 0.0
    %215 = vmatpush1.msra.mxu0 0.0
    %216 = vmatprep.subr.mxu0 0.0
    %217 = vmatpush1.msra.mxu0 0.0
    %218 = vmatprep.subr.mxu0 0.0
    %219 = vmatpush1.msra.mxu0 0.0
    %220 = vmatprep.subr.mxu0 0.0
    %221 = vmatpush1.msra.mxu0 0.0
    %222 = vmatprep.subr.mxu0 0.0
    %223 = vmatpush1.msra.mxu0 0.0
    %224 = vmatprep.subr.mxu0 0.0
    %225 = vmatpush1.msra.mxu0 0.0
    %226 = vmatprep.subr.mxu0 0.0
    %227 = vmatpush1.msra.mxu0 0.0
    %228 = vmatprep.subr.mxu0 0.0
    %229 = vmatpush1.msra.mxu0 0.0
    %230 = vmatprep.subr.mxu0 0.0
    %231 = vmatpush1.msra.mxu0 0.0
    %232 = vmatprep.subr.mxu0 0.0
    %233 = vmatpush1.msra.mxu0 0.0
    %234 = vmatprep.subr.mxu0 0.0
    %235 = vmatpush1.msra.mxu0 0.0
    %236 = vmatprep.subr.mxu0 0.0
    %237 = vmatpush1.msra.mxu0 0.0
    %238 = vmatprep.subr.mxu0 0.0
    %239 = vmatpush1.msra.mxu0 0.0
    %240 = vmatprep.subr.mxu0 0.0
    %241 = vmatpush1.msra.mxu0 0.0
    %242 = vmatprep.subr.mxu0 0.0
    %243 = vmatpush1.msra.mxu0 0.0
    %244 = vmatprep.subr.mxu0 0.0
    %245 = vmatpush1.msra.mxu0 0.0
    %246 = vmatprep.subr.mxu0 0.0
    %247 = vmatpush1.msra.mxu0 0.0
    %248 = vmatprep.subr.mxu0 0.0
    %249 = vmatpush1.msra.mxu0 0.0
    %250 = vmatprep.subr.mxu0 0.0
    %251 = vmatpush1.msra.mxu0 0.0
    %252 = vmatprep.subr.mxu0 0.0
    %253 = vmatpush1.msra.mxu0 0.0
    %254 = vmatprep.mubr.f32.mxu0 0.0
    %255 = vmatmul.mubr.f32.gmra.mrb[0].mxu0 %v117
    %v256 = vpop.f32.mrb[0].mxu0
    %v257 = vadd.f32 %v111, %v256
    %v258 = vpop.f32.mrb[0].mxu0
    %259 = vdwg.mxu0
    %v260 = vld [vmem:[%s5] sm:$0xff]
    %v261 = vld [vmem:[%s5 + $0x8] sm:$0xff]
    %v262 = vld [vmem:[%s5 + $0x10] sm:$0xff]
    %v263 = vld [vmem:[%s5 + $0x18] sm:$0xff]
    %v265 = vsel %vm115, %v81, 0
    %v268 = vsel %vm115, %v82, 0
    %270 = vmatprep.subr.mxu0 0.0
    %271 = vmatpush1.msra.mxu0 %v260
    %272 = vmatprep.subr.mxu0 0.0
    %273 = vmatpush1.msra.mxu0 %v261
    %274 = vmatprep.subr.mxu0 0.0
    %275 = vmatpush1.msra.mxu0 %v262
    %276 = vmatprep.subr.mxu0 0.0
    %277 = vmatpush1.msra.mxu0 %v263
    %278 = vmatprep.subr.mxu0 0.0
    %279 = vmatpush1.msra.mxu0 0.0
    %280 = vmatprep.subr.mxu0 0.0
    %281 = vmatpush1.msra.mxu0 0.0
    %282 = vmatprep.subr.mxu0 0.0
    %283 = vmatpush1.msra.mxu0 0.0
    %284 = vmatprep.subr.mxu0 0.0
    %285 = vmatpush1.msra.mxu0 0.0
    %286 = vmatprep.subr.mxu0 0.0
    %287 = vmatpush1.msra.mxu0 0.0
    %288 = vmatprep.subr.mxu0 0.0
    %289 = vmatpush1.msra.mxu0 0.0
    %290 = vmatprep.subr.mxu0 0.0
    %291 = vmatpush1.msra.mxu0 0.0
    %292 = vmatprep.subr.mxu0 0.0
    %293 = vmatpush1.msra.mxu0 0.0
    %294 = vmatprep.subr.mxu0 0.0
    %295 = vmatpush1.msra.mxu0 0.0
    %296 = vmatprep.subr.mxu0 0.0
    %297 = vmatpush1.msra.mxu0 0.0
    %298 = vmatprep.subr.mxu0 0.0
    %299 = vmatpush1.msra.mxu0 0.0
    %300 = vmatprep.subr.mxu0 0.0
    %301 = vmatpush1.msra.mxu0 0.0
    %302 = vmatprep.subr.mxu0 0.0
    %303 = vmatpush1.msra.mxu0 0.0
    %304 = vmatprep.subr.mxu0 0.0
    %305 = vmatpush1.msra.mxu0 0.0
    %306 = vmatprep.subr.mxu0 0.0
    %307 = vmatpush1.msra.mxu0 0.0
    %308 = vmatprep.subr.mxu0 0.0
    %309 = vmatpush1.msra.mxu0 0.0
    %310 = vmatprep.subr.mxu0 0.0
    %311 = vmatpush1.msra.mxu0 0.0
    %312 = vmatprep.subr.mxu0 0.0
    %313 = vmatpush1.msra.mxu0 0.0
    %314 = vmatprep.subr.mxu0 0.0
    %315 = vmatpush1.msra.mxu0 0.0
    %316 = vmatprep.subr.mxu0 0.0
    %317 = vmatpush1.msra.mxu0 0.0
    %318 = vmatprep.subr.mxu0 0.0
    %319 = vmatpush1.msra.mxu0 0.0
    %320 = vmatprep.subr.mxu0 0.0
    %321 = vmatpush1.msra.mxu0 0.0
    %322 = vmatprep.subr.mxu0 0.0
    %323 = vmatpush1.msra.mxu0 0.0
    %324 = vmatprep.subr.mxu0 0.0
    %325 = vmatpush1.msra.mxu0 0.0
    %326 = vmatprep.subr.mxu0 0.0
    %327 = vmatpush1.msra.mxu0 0.0
    %328 = vmatprep.subr.mxu0 0.0
    %329 = vmatpush1.msra.mxu0 0.0
    %330 = vmatprep.subr.mxu0 0.0
    %331 = vmatpush1.msra.mxu0 0.0
    %332 = vmatprep.subr.mxu0 0.0
    %333 = vmatpush1.msra.mxu0 0.0
    %334 = vmatprep.mubr.f32.mxu0 0.0
    %335 = vmatmul.mubr.f32.gmra.mrb[0].mxu0 %v265
    %v336 = vpop.f32.mrb[0].mxu0
    %v337 = vadd.f32 0.0, %v336
    %v338 = vpop.f32.mrb[0].mxu0
    %339 = vmatprep.mubr.f32.mxu0 0.0
    %340 = vmatmul.mubr.f32.gmra.mrb[0].mxu0 %v268
    %v341 = vpop.f32.mrb[0].mxu0
    %v342 = vadd.f32 0.0, %v341
    %v343 = vpop.f32.mrb[0].mxu0
    %344 = vdwg.mxu0
    %v347 = vunpack.c.l.s4 1966171168
    %v348 = vunpack.c.0.s8 %v347
    %v349 = vlaneseq
    %v350 = vshrl.u32 %v349, 7
    %v351 = vsub.s32 %v348, %v350
    %v352 = vrot.slane %v186, %v351
    %v353 = vcombine.high %v352, %v352
    %v355 = vunpack.c.l.s4 1966171168
    %v356 = vunpack.c.0.s8 %v355
    %v357 = vlaneseq
    %v358 = vshrl.u32 %v357, 7
    %v359 = vsub.s32 %v356, %v358
    %v360 = vrot.slane %v352, %v359
    %v362 = vunpack.c.l.s4 1966171168
    %v363 = vunpack.c.0.s8 %v362
    %v364 = vlaneseq
    %v365 = vshrl.u32 %v364, 7
    %v366 = vsub.s32 %v363, %v365
    %v367 = vrot.slane %v353, %v366
    %v368 = vlaneseq
    %v369 = vshrl.u32 %v368, 7
    %v370 = vsub.s32 0, %v369
    %v371 = vrot.slane %v360, %v370
    %v372 = vlaneseq
    %v373 = vshrl.u32 %v372, 7
    %v374 = vsub.s32 0, %v373
    %v375 = vrot.slane %v367, %v374
    %v378 = vadd.f32 %v337, %v371
    %v379 = vadd.f32 %v342, %v375
    %v380 = vtanh.pop %v378
    %v381 = vtanh.pop %v379
    %v382 = vld [vmem:[%s8] sm:$0x1]
    %v384 = vlaneseq
    %v385 = vshrl.u32 %v384, 7
    %v386 = vsub.s32 0, %v385
    %v387 = vrot.slane %v382, %v386
    %v389 = vmul.f32 %v380, %v387
    %v390 = vmul.f32 %v381, %v387
    %v391 = vsel %vm115, %v389, 0.0
    %392 = vadd.xlane.f32.xlu0 %v391
    %v393 = vpop.xlane.xlu0 %392
    %v394 = vsel %vm115, %v390, 0.0
    %395 = vadd.xlane.f32.xlu0 %v394
    %v396 = vpop.xlane.xlu0 %395
    %s397 = sld [smem:[#allocation2]]
    %v398 = vstv %s397
    %v399 = vadd.f32 %v393, %v398
    %v400 = vadd.f32 %v396, %v398
    %v403 = vlaneseq
    %v404 = vand.u32 %v403, 127
    %v405 = vlaneseq
    %v406 = vshrl.u32 %v405, 7
    %v407 = vsub.s32 %v404, %v406
    %v408 = vrot.slane %v399, %v407
    %v409 = vlaneseq
    %v410 = vshrl.u32 %v409, 7
    %v411 = vsub.s32 %v404, %v410
    %v412 = vrot.slane %v400, %v411
    %vm413 = vcmask 1041409
    %v414 = vsel %vm413, %v412, %v408
    %vm416 = vcmask 58368
    %v417 = vsel %vm416, %v414, -inf
    %418 = vmax.xlane.f32.xlu0 %v417
    %v419 = vpop.xlane.xlu0 %418
    %v421 = vlaneseq
    %v422 = vshrl.u32 %v421, 7
    %v423 = vsub.s32 0, %v422
    %v424 = vrot.slane %v419, %v423
    %v425 = vlaneseq
    %v426 = vshrl.u32 %v425, 7
    %v427 = vsub.s32 1, %v426
    %v428 = vrot.slane %v419, %v427
    %v431 = vsub.f32 %v399, %v424
    %v432 = vsub.f32 %v400, %v428
    %v433 = vmul.f32 %v431, 1.442695
    %v434 = vpow.pop %v433
    %v435 = vmul.f32 %v432, 1.442695
    %v436 = vpow.pop %v435
    %439 = vset.pattern.permute.xlu0 0
    %440 = vperm.xlu0 %439, %v434
    %v441 = vpop.permute.xlu0 %440
    %442 = vset.pattern.permute.xlu0 0
    %443 = vperm.xlu0 %442, %v436
    %v444 = vpop.permute.xlu0 %443
    %v445 = vlaneseq
    %v446 = vshrl.u32 %v445, 7
    %v447 = vsub.s32 %v404, %v446
    %v448 = vrot.slane %v441, %v447
    %v449 = vlaneseq
    %v450 = vshrl.u32 %v449, 7
    %v451 = vsub.s32 %v404, %v450
    %v452 = vrot.slane %v444, %v451
    %v453 = vsel %vm413, %v452, %v448
    %v455 = vsel %vm416, %v453, 0.0
    %456 = vadd.xlane.f32.xlu0 %v455
    %v457 = vpop.xlane.xlu0 %456
    %v459 = vlaneseq
    %v460 = vshrl.u32 %v459, 7
    %v461 = vsub.s32 0, %v460
    %v462 = vrot.slane %v457, %v461
    %v463 = vlaneseq
    %v464 = vshrl.u32 %v463, 7
    %v465 = vsub.s32 1, %v464
    %v466 = vrot.slane %v457, %v465
    %v469 = vrcp.pop %v462
    %v470 = vmul.f32 %v434, %v469
    %v471 = vrcp.pop %v466
    %v472 = vmul.f32 %v436, %v471
    %474 = vset.pattern.permute.xlu0 0
    %475 = vperm.xlu0 %474, %v470
    %v476 = vpop.permute.xlu0 %475
    %479 = vset.pattern.permute.xlu0 0
    %480 = vperm.xlu0 %479, %v472
    %v481 = vpop.permute.xlu0 %480
    %v483 = vmul.f32 %v81, %v476
    %v484 = vmul.f32 %v82, %v481
    %v485 = vsel %vm115, %v483, 0.0
    %v486 = vrot.slane %v485, 4
    %v487 = vadd.f32 %v485, %v486
    %v488 = vrot.slane %v487, 2
    %v489 = vadd.f32 %v487, %v488
    %v490 = vrot.slane %v489, 1
    %v491 = vadd.f32 %v489, %v490
    %v492 = vsel %vm115, %v484, 0.0
    %v493 = vrot.slane %v492, 4
    %v494 = vadd.f32 %v492, %v493
    %v495 = vrot.slane %v494, 2
    %v496 = vadd.f32 %v494, %v495
    %v497 = vrot.slane %v496, 1
    %v498 = vadd.f32 %v496, %v497
    %501 = vrot.lane.b32.xlu0 %v389, 96
    %v502 = vpop.permute.xlu0 %501
    %503 = vrot.lane.b32.xlu0 %v390, 96
    %v504 = vpop.permute.xlu0 %503
    %v507 = vsel %vm115, %v502, 0.0
    %508 = vadd.xlane.f32.xlu0 %v507
    %v509 = vpop.xlane.xlu0 %508
    %v510 = vsel %vm115, %v504, 0.0
    %511 = vadd.xlane.f32.xlu0 %v510
    %v512 = vpop.xlane.xlu0 %511
    %s513 = sld [smem:[#allocation2 + $0x1]]
    %v514 = vstv %s513
    %v515 = vadd.f32 %v509, %v514
    %v516 = vadd.f32 %v512, %v514
    %v519 = vlaneseq
    %v520 = vshrl.u32 %v519, 7
    %v521 = vsub.s32 %v404, %v520
    %v522 = vrot.slane %v515, %v521
    %v523 = vlaneseq
    %v524 = vshrl.u32 %v523, 7
    %v525 = vsub.s32 %v404, %v524
    %v526 = vrot.slane %v516, %v525
    %v527 = vsel %vm413, %v526, %v522
    %v529 = vsel %vm416, %v527, -inf
    %530 = vmax.xlane.f32.xlu0 %v529
    %v531 = vpop.xlane.xlu0 %530
    %v533 = vlaneseq
    %v534 = vshrl.u32 %v533, 7
    %v535 = vsub.s32 0, %v534
    %v536 = vrot.slane %v531, %v535
    %v537 = vlaneseq
    %v538 = vshrl.u32 %v537, 7
    %v539 = vsub.s32 1, %v538
    %v540 = vrot.slane %v531, %v539
    %v543 = vsub.f32 %v515, %v536
    %v544 = vsub.f32 %v516, %v540
    %v545 = vmul.f32 %v543, 1.442695
    %v546 = vpow.pop %v545
    %v547 = vmul.f32 %v544, 1.442695
    %v548 = vpow.pop %v547
    %551 = vset.pattern.permute.xlu0 0
    %552 = vperm.xlu0 %551, %v546
    %v553 = vpop.permute.xlu0 %552
    %554 = vset.pattern.permute.xlu0 0
    %555 = vperm.xlu0 %554, %v548
    %v556 = vpop.permute.xlu0 %555
    %v557 = vlaneseq
    %v558 = vshrl.u32 %v557, 7
    %v559 = vsub.s32 %v404, %v558
    %v560 = vrot.slane %v553, %v559
    %v561 = vlaneseq
    %v562 = vshrl.u32 %v561, 7
    %v563 = vsub.s32 %v404, %v562
    %v564 = vrot.slane %v556, %v563
    %v565 = vsel %vm413, %v564, %v560
    %v567 = vsel %vm416, %v565, 0.0
    %568 = vadd.xlane.f32.xlu0 %v567
    %v569 = vpop.xlane.xlu0 %568
    %v571 = vlaneseq
    %v572 = vshrl.u32 %v571, 7
    %v573 = vsub.s32 0, %v572
    %v574 = vrot.slane %v569, %v573
    %v575 = vlaneseq
    %v576 = vshrl.u32 %v575, 7
    %v577 = vsub.s32 1, %v576
    %v578 = vrot.slane %v569, %v577
    %v581 = vrcp.pop %v574
    %v582 = vmul.f32 %v546, %v581
    %v583 = vrcp.pop %v578
    %v584 = vmul.f32 %v548, %v583
    %586 = vset.pattern.permute.xlu0 0
    %587 = vperm.xlu0 %586, %v582
    %v588 = vpop.permute.xlu0 %587
    %591 = vset.pattern.permute.xlu0 0
    %592 = vperm.xlu0 %591, %v584
    %v593 = vpop.permute.xlu0 %592
    %v595 = vmul.f32 %v81, %v588
    %v596 = vmul.f32 %v82, %v593
    %v597 = vsel %vm115, %v595, 0.0
    %v598 = vrot.slane %v597, 4
    %v599 = vadd.f32 %v597, %v598
    %v600 = vrot.slane %v599, 2
    %v601 = vadd.f32 %v599, %v600
    %v602 = vrot.slane %v601, 1
    %v603 = vadd.f32 %v601, %v602
    %v604 = vsel %vm115, %v596, 0.0
    %v605 = vrot.slane %v604, 4
    %v606 = vadd.f32 %v604, %v605
    %v607 = vrot.slane %v606, 2
    %v608 = vadd.f32 %v606, %v607
    %v609 = vrot.slane %v608, 1
    %v610 = vadd.f32 %v608, %v609
    %611 = vrot.lane.b32.xlu0 %v389, 64
    %v612 = vpop.permute.xlu0 %611
    %613 = vrot.lane.b32.xlu0 %v390, 64
    %v614 = vpop.permute.xlu0 %613
    %v617 = vsel %vm115, %v612, 0.0
    %618 = vadd.xlane.f32.xlu0 %v617
    %v619 = vpop.xlane.xlu0 %618
    %v620 = vsel %vm115, %v614, 0.0
    %621 = vadd.xlane.f32.xlu0 %v620
    %v622 = vpop.xlane.xlu0 %621
    %s623 = sld [smem:[#allocation2 + $0x2]]
    %v624 = vstv %s623
    %v625 = vadd.f32 %v619, %v624
    %v626 = vadd.f32 %v622, %v624
    %v629 = vlaneseq
    %v630 = vshrl.u32 %v629, 7
    %v631 = vsub.s32 %v404, %v630
    %v632 = vrot.slane %v625, %v631
    %v633 = vlaneseq
    %v634 = vshrl.u32 %v633, 7
    %v635 = vsub.s32 %v404, %v634
    %v636 = vrot.slane %v626, %v635
    %v637 = vsel %vm413, %v636, %v632
    %v639 = vsel %vm416, %v637, -inf
    %640 = vmax.xlane.f32.xlu0 %v639
    %v641 = vpop.xlane.xlu0 %640
    %v643 = vlaneseq
    %v644 = vshrl.u32 %v643, 7
    %v645 = vsub.s32 0, %v644
    %v646 = vrot.slane %v641, %v645
    %v647 = vlaneseq
    %v648 = vshrl.u32 %v647, 7
    %v649 = vsub.s32 1, %v648
    %v650 = vrot.slane %v641, %v649
    %v653 = vsub.f32 %v625, %v646
    %v654 = vsub.f32 %v626, %v650
    %v655 = vmul.f32 %v653, 1.442695
    %v656 = vpow.pop %v655
    %v657 = vmul.f32 %v654, 1.442695
    %v658 = vpow.pop %v657
    %661 = vset.pattern.permute.xlu0 0
    %662 = vperm.xlu0 %661, %v656
    %v663 = vpop.permute.xlu0 %662
    %664 = vset.pattern.permute.xlu0 0
    %665 = vperm.xlu0 %664, %v658
    %v666 = vpop.permute.xlu0 %665
    %v667 = vlaneseq
    %v668 = vshrl.u32 %v667, 7
    %v669 = vsub.s32 %v404, %v668
    %v670 = vrot.slane %v663, %v669
    %v671 = vlaneseq
    %v672 = vshrl.u32 %v671, 7
    %v673 = vsub.s32 %v404, %v672
    %v674 = vrot.slane %v666, %v673
    %v675 = vsel %vm413, %v674, %v670
    %v677 = vsel %vm416, %v675, 0.0
    %678 = vadd.xlane.f32.xlu0 %v677
    %v679 = vpop.xlane.xlu0 %678
    %v681 = vlaneseq
    %v682 = vshrl.u32 %v681, 7
    %v683 = vsub.s32 0, %v682
    %v684 = vrot.slane %v679, %v683
    %v685 = vlaneseq
    %v686 = vshrl.u32 %v685, 7
    %v687 = vsub.s32 1, %v686
    %v688 = vrot.slane %v679, %v687
    %v691 = vrcp.pop %v684
    %v692 = vmul.f32 %v656, %v691
    %v693 = vrcp.pop %v688
    %v694 = vmul.f32 %v658, %v693
    %696 = vset.pattern.permute.xlu0 0
    %697 = vperm.xlu0 %696, %v692
    %v698 = vpop.permute.xlu0 %697
    %701 = vset.pattern.permute.xlu0 0
    %702 = vperm.xlu0 %701, %v694
    %v703 = vpop.permute.xlu0 %702
    %v705 = vmul.f32 %v81, %v698
    %v706 = vmul.f32 %v82, %v703
    %v707 = vsel %vm115, %v705, 0.0
    %v708 = vrot.slane %v707, 4
    %v709 = vadd.f32 %v707, %v708
    %v710 = vrot.slane %v709, 2
    %v711 = vadd.f32 %v709, %v710
    %v712 = vrot.slane %v711, 1
    %v713 = vadd.f32 %v711, %v712
    %v714 = vsel %vm115, %v706, 0.0
    %v715 = vrot.slane %v714, 4
    %v716 = vadd.f32 %v714, %v715
    %v717 = vrot.slane %v716, 2
    %v718 = vadd.f32 %v716, %v717
    %v719 = vrot.slane %v718, 1
    %v720 = vadd.f32 %v718, %v719
    %v723 = vsel %vm413, %v498, %v491
    %v727 = vsel %vm413, %v610, %v603
    %728 = vrot.lane.b32.xlu0 %v727, 32
    %v729 = vpop.permute.xlu0 %728
    %v733 = vsel %vm413, %v720, %v713
    %734 = vrot.lane.b32.xlu0 %v733, 64
    %v735 = vpop.permute.xlu0 %734
    %v737 = vsel %vm115, %v723, %v729
    %vm738 = vcmask 523264
    %v739 = vsel %vm738, %v737, %v735
    %v740 = vld [vmem:[%s9] sm:$0xff]
    %v741 = vld [vmem:[%s9 + $0x8] sm:$0xff]
    %v742 = vld [vmem:[%s9 + $0x10] sm:$0xff]
    %v743 = vld [vmem:[#allocation6] sm:$0xff]
    %v744 = vld [vmem:[#allocation6 + $0x8] sm:$0xff]
    %v745 = vld [vmem:[#allocation6 + $0x10] sm:$0xff]
    %v746 = vld [vmem:[#allocation6 + $0x18] sm:$0xff]
    %v747 = vld [vmem:[#allocation6 + $0x20] sm:$0xff]
    %v748 = vld [vmem:[#allocation6 + $0x28] sm:$0xff]
    %v749 = vld [vmem:[#allocation6 + $0x30] sm:$0xff]
    %v750 = vld [vmem:[#allocation6 + $0x38] sm:$0xff]
    %v751 = vld [vmem:[#allocation6 + $0x40] sm:$0xff]
    %v752 = vld [vmem:[#allocation6 + $0x48] sm:$0xff]
    %v753 = vld [vmem:[#allocation6 + $0x50] sm:$0xff]
    %v754 = vld [vmem:[#allocation6 + $0x58] sm:$0xff]
    %v755 = vld [vmem:[#allocation6 + $0x60] sm:$0xff]
    %v756 = vld [vmem:[#allocation6 + $0x68] sm:$0xff]
    %v757 = vld [vmem:[#allocation6 + $0x70] sm:$0xff]
    %v758 = vld [vmem:[#allocation6 + $0x78] sm:$0xff]
    %v759 = vld [vmem:[#allocation6 + $0x80] sm:$0xff]
    %v760 = vld [vmem:[#allocation6 + $0x88] sm:$0xff]
    %v761 = vld [vmem:[#allocation6 + $0x90] sm:$0xff]
    %v762 = vld [vmem:[#allocation6 + $0x98] sm:$0xff]
    %v763 = vld [vmem:[#allocation6 + $0xa0] sm:$0xff]
    %v764 = vld [vmem:[#allocation6 + $0xa8] sm:$0xff]
    %v765 = vld [vmem:[#allocation6 + $0xb0] sm:$0xff]
    %v766 = vld [vmem:[#allocation6 + $0xb8] sm:$0xff]
    %v767 = vld [vmem:[#allocation6 + $0xc0] sm:$0xff]
    %v768 = vld [vmem:[#allocation6 + $0xc8] sm:$0xff]
    %v769 = vld [vmem:[#allocation6 + $0xd0] sm:$0xff]
    %v770 = vld [vmem:[#allocation6 + $0xd8] sm:$0xff]
    %v771 = vld [vmem:[#allocation6 + $0xe0] sm:$0xff]
    %v772 = vld [vmem:[#allocation6 + $0xe8] sm:$0xff]
    %v773 = vld [vmem:[#allocation6 + $0xf0] sm:$0xff]
    %v774 = vld [vmem:[#allocation6 + $0xf8] sm:$0xff]
    %v775 = vld [vmem:[#allocation6 + $0x100] sm:$0xff]
    %v776 = vld [vmem:[#allocation6 + $0x108] sm:$0xff]
    %v777 = vld [vmem:[#allocation6 + $0x110] sm:$0xff]
    %v778 = vld [vmem:[#allocation6 + $0x118] sm:$0xff]
    %vm779 = vcmask 785408
    %v781 = vsel %vm779, %v739, 0
    %783 = vmatprep.subr.mxu0 %v744
    %784 = vmatpush1.msra.mxu0 %v743
    %785 = vmatprep.subr.mxu0 %v747
    %786 = vmatpush1.msra.mxu0 %v746
    %787 = vmatprep.subr.mxu0 %v750
    %788 = vmatpush1.msra.mxu0 %v749
    %789 = vmatprep.subr.mxu0 %v753
    %790 = vmatpush1.msra.mxu0 %v752
    %791 = vmatprep.subr.mxu0 %v756
    %792 = vmatpush1.msra.mxu0 %v755
    %793 = vmatprep.subr.mxu0 %v759
    %794 = vmatpush1.msra.mxu0 %v758
    %795 = vmatprep.subr.mxu0 %v762
    %796 = vmatpush1.msra.mxu0 %v761
    %797 = vmatprep.subr.mxu0 %v765
    %798 = vmatpush1.msra.mxu0 %v764
    %799 = vmatprep.subr.mxu0 %v768
    %800 = vmatpush1.msra.mxu0 %v767
    %801 = vmatprep.subr.mxu0 %v771
    %802 = vmatpush1.msra.mxu0 %v770
    %803 = vmatprep.subr.mxu0 %v774
    %804 = vmatpush1.msra.mxu0 %v773
    %805 = vmatprep.subr.mxu0 %v777
    %806 = vmatpush1.msra.mxu0 %v776
    %807 = vmatprep.subr.mxu0 0.0
    %808 = vmatpush1.msra.mxu0 0.0
    %809 = vmatprep.subr.mxu0 0.0
    %810 = vmatpush1.msra.mxu0 0.0
    %811 = vmatprep.subr.mxu0 0.0
    %812 = vmatpush1.msra.mxu0 0.0
    %813 = vmatprep.subr.mxu0 0.0
    %814 = vmatpush1.msra.mxu0 0.0
    %815 = vmatprep.subr.mxu0 0.0
    %816 = vmatpush1.msra.mxu0 0.0
    %817 = vmatprep.subr.mxu0 0.0
    %818 = vmatpush1.msra.mxu0 0.0
    %819 = vmatprep.subr.mxu0 0.0
    %820 = vmatpush1.msra.mxu0 0.0
    %821 = vmatprep.subr.mxu0 0.0
    %822 = vmatpush1.msra.mxu0 0.0
    %823 = vmatprep.subr.mxu0 0.0
    %824 = vmatpush1.msra.mxu0 0.0
    %825 = vmatprep.subr.mxu0 0.0
    %826 = vmatpush1.msra.mxu0 0.0
    %827 = vmatprep.subr.mxu0 0.0
    %828 = vmatpush1.msra.mxu0 0.0
    %829 = vmatprep.subr.mxu0 0.0
    %830 = vmatpush1.msra.mxu0 0.0
    %831 = vmatprep.subr.mxu0 0.0
    %832 = vmatpush1.msra.mxu0 0.0
    %833 = vmatprep.subr.mxu0 0.0
    %834 = vmatpush1.msra.mxu0 0.0
    %835 = vmatprep.subr.mxu0 0.0
    %836 = vmatpush1.msra.mxu0 0.0
    %837 = vmatprep.subr.mxu0 0.0
    %838 = vmatpush1.msra.mxu0 0.0
    %839 = vmatprep.subr.mxu0 0.0
    %840 = vmatpush1.msra.mxu0 0.0
    %841 = vmatprep.subr.mxu0 0.0
    %842 = vmatpush1.msra.mxu0 0.0
    %843 = vmatprep.subr.mxu0 0.0
    %844 = vmatpush1.msra.mxu0 0.0
    %845 = vmatprep.subr.mxu0 0.0
    %846 = vmatpush1.msra.mxu0 0.0
    %847 = vmatprep.mubr.f32.mxu0 0.0
    %848 = vmatmul.mubr.f32.gmra.mrb[0].mxu0 %v781
    %v849 = vpop.f32.mrb[0].mxu0
    %v850 = vadd.f32 0.0, %v849
    %v851 = vpop.f32.mrb[0].mxu0
    %v852 = vadd.f32 0.0, %v851
    %853 = vdwg.mxu0
    %854 = vmatprep.subr.mxu0 0.0
    %855 = vmatpush1.msra.mxu0 %v745
    %856 = vmatprep.subr.mxu0 0.0
    %857 = vmatpush1.msra.mxu0 %v748
    %858 = vmatprep.subr.mxu0 0.0
    %859 = vmatpush1.msra.mxu0 %v751
    %860 = vmatprep.subr.mxu0 0.0
    %861 = vmatpush1.msra.mxu0 %v754
    %862 = vmatprep.subr.mxu0 0.0
    %863 = vmatpush1.msra.mxu0 %v757
    %864 = vmatprep.subr.mxu0 0.0
    %865 = vmatpush1.msra.mxu0 %v760
    %866 = vmatprep.subr.mxu0 0.0
    %867 = vmatpush1.msra.mxu0 %v763
    %868 = vmatprep.subr.mxu0 0.0
    %869 = vmatpush1.msra.mxu0 %v766
    %870 = vmatprep.subr.mxu0 0.0
    %871 = vmatpush1.msra.mxu0 %v769
    %872 = vmatprep.subr.mxu0 0.0
    %873 = vmatpush1.msra.mxu0 %v772
    %874 = vmatprep.subr.mxu0 0.0
    %875 = vmatpush1.msra.mxu0 %v775
    %876 = vmatprep.subr.mxu0 0.0
    %877 = vmatpush1.msra.mxu0 %v778
    %878 = vmatprep.subr.mxu0 0.0
    %879 = vmatpush1.msra.mxu0 0.0
    %880 = vmatprep.subr.mxu0 0.0
    %881 = vmatpush1.msra.mxu0 0.0
    %882 = vmatprep.subr.mxu0 0.0
    %883 = vmatpush1.msra.mxu0 0.0
    %884 = vmatprep.subr.mxu0 0.0
    %885 = vmatpush1.msra.mxu0 0.0
    %886 = vmatprep.subr.mxu0 0.0
    %887 = vmatpush1.msra.mxu0 0.0
    %888 = vmatprep.subr.mxu0 0.0
    %889 = vmatpush1.msra.mxu0 0.0
    %890 = vmatprep.subr.mxu0 0.0
    %891 = vmatpush1.msra.mxu0 0.0
    %892 = vmatprep.subr.mxu0 0.0
    %893 = vmatpush1.msra.mxu0 0.0
    %894 = vmatprep.subr.mxu0 0.0
    %895 = vmatpush1.msra.mxu0 0.0
    %896 = vmatprep.subr.mxu0 0.0
    %897 = vmatpush1.msra.mxu0 0.0
    %898 = vmatprep.subr.mxu0 0.0
    %899 = vmatpush1.msra.mxu0 0.0
    %900 = vmatprep.subr.mxu0 0.0
    %901 = vmatpush1.msra.mxu0 0.0
    %902 = vmatprep.subr.mxu0 0.0
    %903 = vmatpush1.msra.mxu0 0.0
    %904 = vmatprep.subr.mxu0 0.0
    %905 = vmatpush1.msra.mxu0 0.0
    %906 = vmatprep.subr.mxu0 0.0
    %907 = vmatpush1.msra.mxu0 0.0
    %908 = vmatprep.subr.mxu0 0.0
    %909 = vmatpush1.msra.mxu0 0.0
    %910 = vmatprep.subr.mxu0 0.0
    %911 = vmatpush1.msra.mxu0 0.0
    %912 = vmatprep.subr.mxu0 0.0
    %913 = vmatpush1.msra.mxu0 0.0
    %914 = vmatprep.subr.mxu0 0.0
    %915 = vmatpush1.msra.mxu0 0.0
    %916 = vmatprep.subr.mxu0 0.0
    %917 = vmatpush1.msra.mxu0 0.0
    %918 = vmatprep.mubr.f32.mxu0 0.0
    %919 = vmatmul.mubr.f32.gmra.mrb[0].mxu0 %v781
    %v920 = vpop.f32.mrb[0].mxu0
    %v921 = vadd.f32 0.0, %v920
    %v922 = vpop.f32.mrb[0].mxu0
    %923 = vdwg.mxu0
    %vm924 = vcmask 64512
    %v926 = vsel %vm924, %v84, 0
    %928 = vmatprep.subr.mxu0 %v741
    %929 = vmatpush1.msra.mxu0 %v740
    %930 = vmatprep.subr.mxu0 0.0
    %931 = vmatpush1.msra.mxu0 0.0
    %932 = vmatprep.subr.mxu0 0.0
    %933 = vmatpush1.msra.mxu0 0.0
    %934 = vmatprep.subr.mxu0 0.0
    %935 = vmatpush1.msra.mxu0 0.0
    %936 = vmatprep.subr.mxu0 0.0
    %937 = vmatpush1.msra.mxu0 0.0
    %938 = vmatprep.subr.mxu0 0.0
    %939 = vmatpush1.msra.mxu0 0.0
    %940 = vmatprep.subr.mxu0 0.0
    %941 = vmatpush1.msra.mxu0 0.0
    %942 = vmatprep.subr.mxu0 0.0
    %943 = vmatpush1.msra.mxu0 0.0
    %944 = vmatprep.subr.mxu0 0.0
    %945 = vmatpush1.msra.mxu0 0.0
    %946 = vmatprep.subr.mxu0 0.0
    %947 = vmatpush1.msra.mxu0 0.0
    %948 = vmatprep.subr.mxu0 0.0
    %949 = vmatpush1.msra.mxu0 0.0
    %950 = vmatprep.subr.mxu0 0.0
    %951 = vmatpush1.msra.mxu0 0.0
    %952 = vmatprep.subr.mxu0 0.0
    %953 = vmatpush1.msra.mxu0 0.0
    %954 = vmatprep.subr.mxu0 0.0
    %955 = vmatpush1.msra.mxu0 0.0
    %956 = vmatprep.subr.mxu0 0.0
    %957 = vmatpush1.msra.mxu0 0.0
    %958 = vmatprep.subr.mxu0 0.0
    %959 = vmatpush1.msra.mxu0 0.0
    %960 = vmatprep.subr.mxu0 0.0
    %961 = vmatpush1.msra.mxu0 0.0
    %962 = vmatprep.subr.mxu0 0.0
    %963 = vmatpush1.msra.mxu0 0.0
    %964 = vmatprep.subr.mxu0 0.0
    %965 = vmatpush1.msra.mxu0 0.0
    %966 = vmatprep.subr.mxu0 0.0
    %967 = vmatpush1.msra.mxu0 0.0
    %968 = vmatprep.subr.mxu0 0.0
    %969 = vmatpush1.msra.mxu0 0.0
    %970 = vmatprep.subr.mxu0 0.0
    %971 = vmatpush1.msra.mxu0 0.0
    %972 = vmatprep.subr.mxu0 0.0
    %973 = vmatpush1.msra.mxu0 0.0
    %974 = vmatprep.subr.mxu0 0.0
    %975 = vmatpush1.msra.mxu0 0.0
    %976 = vmatprep.subr.mxu0 0.0
    %977 = vmatpush1.msra.mxu0 0.0
    %978 = vmatprep.subr.mxu0 0.0
    %979 = vmatpush1.msra.mxu0 0.0
    %980 = vmatprep.subr.mxu0 0.0
    %981 = vmatpush1.msra.mxu0 0.0
    %982 = vmatprep.subr.mxu0 0.0
    %983 = vmatpush1.msra.mxu0 0.0
    %984 = vmatprep.subr.mxu0 0.0
    %985 = vmatpush1.msra.mxu0 0.0
    %986 = vmatprep.subr.mxu0 0.0
    %987 = vmatpush1.msra.mxu0 0.0
    %988 = vmatprep.subr.mxu0 0.0
    %989 = vmatpush1.msra.mxu0 0.0
    %990 = vmatprep.subr.mxu0 0.0
    %991 = vmatpush1.msra.mxu0 0.0
    %992 = vmatprep.mubr.f32.mxu0 0.0
    %993 = vmatmul.mubr.f32.gmra.mrb[0].mxu0 %v926
    %v994 = vpop.f32.mrb[0].mxu0
    %v995 = vadd.f32 %v850, %v994
    %v996 = vpop.f32.mrb[0].mxu0
    %v997 = vadd.f32 %v852, %v996
    %998 = vdwg.mxu0
    %999 = vmatprep.subr.mxu0 0.0
    %1000 = vmatpush1.msra.mxu0 %v742
    %1001 = vmatprep.subr.mxu0 0.0
    %1002 = vmatpush1.msra.mxu0 0.0
    %1003 = vmatprep.subr.mxu0 0.0
    %1004 = vmatpush1.msra.mxu0 0.0
    %1005 = vmatprep.subr.mxu0 0.0
    %1006 = vmatpush1.msra.mxu0 0.0
    %1007 = vmatprep.subr.mxu0 0.0
    %1008 = vmatpush1.msra.mxu0 0.0
    %1009 = vmatprep.subr.mxu0 0.0
    %1010 = vmatpush1.msra.mxu0 0.0
    %1011 = vmatprep.subr.mxu0 0.0
    %1012 = vmatpush1.msra.mxu0 0.0
    %1013 = vmatprep.subr.mxu0 0.0
    %1014 = vmatpush1.msra.mxu0 0.0
    %1015 = vmatprep.subr.mxu0 0.0
    %1016 = vmatpush1.msra.mxu0 0.0
    %1017 = vmatprep.subr.mxu0 0.0
    %1018 = vmatpush1.msra.mxu0 0.0
    %1019 = vmatprep.subr.mxu0 0.0
    %1020 = vmatpush1.msra.mxu0 0.0
    %1021 = vmatprep.subr.mxu0 0.0
    %1022 = vmatpush1.msra.mxu0 0.0
    %1023 = vmatprep.subr.mxu0 0.0
    %1024 = vmatpush1.msra.mxu0 0.0
    %1025 = vmatprep.subr.mxu0 0.0
    %1026 = vmatpush1.msra.mxu0 0.0
    %1027 = vmatprep.subr.mxu0 0.0
    %1028 = vmatpush1.msra.mxu0 0.0
    %1029 = vmatprep.subr.mxu0 0.0
    %1030 = vmatpush1.msra.mxu0 0.0
    %1031 = vmatprep.subr.mxu0 0.0
    %1032 = vmatpush1.msra.mxu0 0.0
    %1033 = vmatprep.subr.mxu0 0.0
    %1034 = vmatpush1.msra.mxu0 0.0
    %1035 = vmatprep.subr.mxu0 0.0
    %1036 = vmatpush1.msra.mxu0 0.0
    %1037 = vmatprep.subr.mxu0 0.0
    %1038 = vmatpush1.msra.mxu0 0.0
    %1039 = vmatprep.subr.mxu0 0.0
    %1040 = vmatpush1.msra.mxu0 0.0
    %1041 = vmatprep.subr.mxu0 0.0
    %1042 = vmatpush1.msra.mxu0 0.0
    %1043 = vmatprep.subr.mxu0 0.0
    %1044 = vmatpush1.msra.mxu0 0.0
    %1045 = vmatprep.subr.mxu0 0.0
    %1046 = vmatpush1.msra.mxu0 0.0
    %1047 = vmatprep.subr.mxu0 0.0
    %1048 = vmatpush1.msra.mxu0 0.0
    %1049 = vmatprep.subr.mxu0 0.0
    %1050 = vmatpush1.msra.mxu0 0.0
    %1051 = vmatprep.subr.mxu0 0.0
    %1052 = vmatpush1.msra.mxu0 0.0
    %1053 = vmatprep.subr.mxu0 0.0
    %1054 = vmatpush1.msra.mxu0 0.0
    %1055 = vmatprep.subr.mxu0 0.0
    %1056 = vmatpush1.msra.mxu0 0.0
    %1057 = vmatprep.subr.mxu0 0.0
    %1058 = vmatpush1.msra.mxu0 0.0
    %1059 = vmatprep.subr.mxu0 0.0
    %1060 = vmatpush1.msra.mxu0 0.0
    %1061 = vmatprep.subr.mxu0 0.0
    %1062 = vmatpush1.msra.mxu0 0.0
    %1063 = vmatprep.mubr.f32.mxu0 0.0
    %1064 = vmatmul.mubr.f32.gmra.mrb[0].mxu0 %v926
    %v1065 = vpop.f32.mrb[0].mxu0
    %v1066 = vadd.f32 %v921, %v1065
    %v1067 = vpop.f32.mrb[0].mxu0
    %1068 = vdwg.mxu0
    %v1069 = vld [vmem:[%s10] sm:$0x7]
    %v1071 = vlaneseq
    %v1072 = vshrl.u32 %v1071, 7
    %v1073 = vsub.s32 0, %v1072
    %v1074 = vrot.slane %v1069, %v1073
    %v1075 = vlaneseq
    %v1076 = vshrl.u32 %v1075, 7
    %v1077 = vsub.s32 1, %v1076
    %v1078 = vrot.slane %v1069, %v1077
    %v1079 = vlaneseq
    %v1080 = vshrl.u32 %v1079, 7
    %v1081 = vsub.s32 2, %v1080
    %v1082 = vrot.slane %v1069, %v1081
    %v1086 = vadd.f32 %v995, %v1074
    %v1087 = vadd.f32 %v997, %v1078
    %v1088 = vadd.f32 %v1066, %v1082
    %1090 = vrot.lane.b32.xlu0 %v186, 32
    %v1091 = vpop.permute.xlu0 %1090
    %1092 = vrot.lane.b32.xlu0 %v188, 32
    %v1093 = vpop.permute.xlu0 %1092
    %v1094 = vsel %vm115, %v1091, %v1093
    %v1096 = vadd.f32 %v1086, %v1094
    %v1097 = vxor.u32 %v1096, 2147483648
    %v1098 = vmul.f32 %v1097, 1.442695
    %v1099 = vpow.pop %v1098
    %v1100 = vadd.f32 %v1099, 1.0
    %v1101 = vrcp.pop %v1100
    %v1102 = vmul.f32 1.0, %v1101
    %1104 = vrot.lane.b32.xlu0 %v257, 32
    %v1105 = vpop.permute.xlu0 %1104
    %v1106 = vsel %vm115, %v1093, %v1105
    %v1109 = vadd.f32 %v1086, %v1093
    %v1110 = vadd.f32 %v1087, %v1106
    %v1111 = vxor.u32 %v1109, 2147483648
    %v1112 = vxor.u32 %v1110, 2147483648
    %v1113 = vmul.f32 %v1111, 1.442695
    %v1114 = vpow.pop %v1113
    %v1115 = vmul.f32 %v1112, 1.442695
    %v1116 = vpow.pop %v1115
    %v1117 = vadd.f32 %v1114, 1.0
    %v1118 = vadd.f32 %v1116, 1.0
    %v1119 = vrcp.pop %v1117
    %v1120 = vmul.f32 1.0, %v1119
    %v1121 = vrcp.pop %v1118
    %v1122 = vmul.f32 1.0, %v1121
    %1123 = vrot.lane.b32.xlu0 %v257, 96
    %v1124 = vpop.permute.xlu0 %1123
    %v1126 = vmul.f32 %v1102, %v1124
    %1128 = vrot.lane.b32.xlu0 %v1126, 64
    %v1129 = vpop.permute.xlu0 %1128
    %v1131 = vadd.f32 %v1087, %v1129
    %v1132 = vadd.f32 %v1088, %v1129
    %v1133 = vtanh.pop %v1131
    %v1134 = vtanh.pop %v1132
    %1135 = vrot.lane.b32.xlu0 %v83, 32
    %v1136 = vpop.permute.xlu0 %1135
    %1138 = vrot.lane.b32.xlu0 %v83, 64
    %v1139 = vpop.permute.xlu0 %1138
    %v1141 = vsel %vm115, %v83, %v1136
    %v1142 = vsel %vm738, %v1141, %v1139
    %v1143 = vsub.f32 1.0, %v1120
    %v1144 = vsub.f32 1.0, %v1122
    %1147 = vrot.lane.b32.xlu0 %v1133, 32
    %v1148 = vpop.permute.xlu0 %1147
    %1149 = vrot.lane.b32.xlu0 %v1134, 32
    %v1150 = vpop.permute.xlu0 %1149
    %v1151 = vsel %vm115, %v1148, %v1150
    %v1154 = vmul.f32 %v1143, %v1148
    %v1155 = vmul.f32 %v1144, %v1151
    %1157 = vrot.lane.b32.xlu0 %v1142, 96
    %v1158 = vpop.permute.xlu0 %1157
    %v1160 = vmul.f32 %v1120, %v1158
    %v1161 = vmul.f32 %v1122, %v1158
    %v1162 = vadd.f32 %v1154, %v1160
    %v1163 = vadd.f32 %v1155, %v1161
    %vm1164 = vcmp.eq.s32.totalorder %v85, 1
    %vm1165 = vcmp.eq.s32.totalorder %v85, 2
    %vm1166 = vcmp.eq.s32.totalorder %v85, 3
    %v1167 = vsel %vm1166, 1, 0
    %1168 = vset.pattern.permute.xlu0 0
    %1169 = vperm.xlu0 %1168, %v1167
    %v1170 = vpop.permute.xlu0 %1169
    %vm1171 = vcmp.eq.s32.totalorder %v1170, 1
    %v1172 = vsel %vm1171, %v1163, %v1136
    %v1173 = vsel %vm1165, 1, 0
    %1174 = vset.pattern.permute.xlu0 0
    %1175 = vperm.xlu0 %1174, %v1173
    %v1176 = vpop.permute.xlu0 %1175
    %vm1177 = vcmp.eq.s32.totalorder %v1176, 1
    %1179 = vrot.lane.b32.xlu0 %v1172, 96
    %v1180 = vpop.permute.xlu0 %1179
    %v1182 = vsel %vm1177, %v1163, %v1180
    %v1183 = vsel %vm1164, 1, 0
    %1184 = vset.pattern.permute.xlu0 0
    %1185 = vperm.xlu0 %1184, %v1183
    %v1186 = vpop.permute.xlu0 %1185
    %vm1187 = vcmp.eq.s32.totalorder %v1186, 1
    %1189 = vrot.lane.b32.xlu0 %v1182, 96
    %v1190 = vpop.permute.xlu0 %1189
    %v1192 = vsel %vm1187, %v1162, %v1190
    %v1193 = vlaneseq
    %v1194 = vshrl.u32 %v1193, 7
    %v1195 = vsub.s32 %v404, %v1194
    %v1196 = vrot.slane %v698, %v1195
    %v1197 = vlaneseq
    %v1198 = vshrl.u32 %v1197, 7
    %v1199 = vsub.s32 %v404, %v1198
    %v1200 = vrot.slane %v703, %v1199
    %v1201 = vsel %vm413, %v1200, %v1196
    %v1203 = vsel %vm1171, %v1201, 1.0
    %v1204 = vlaneseq
    %v1205 = vshrl.u32 %v1204, 7
    %v1206 = vsub.s32 %v404, %v1205
    %v1207 = vrot.slane %v588, %v1206
    %v1208 = vlaneseq
    %v1209 = vshrl.u32 %v1208, 7
    %v1210 = vsub.s32 %v404, %v1209
    %v1211 = vrot.slane %v593, %v1210
    %v1212 = vsel %vm413, %v1211, %v1207
    %v1214 = vsel %vm1177, %v1212, %v1203
    %v1215 = vlaneseq
    %v1216 = vshrl.u32 %v1215, 7
    %v1217 = vsub.s32 %v404, %v1216
    %v1218 = vrot.slane %v476, %v1217
    %v1219 = vlaneseq
    %v1220 = vshrl.u32 %v1219, 7
    %v1221 = vsub.s32 %v404, %v1220
    %v1222 = vrot.slane %v481, %v1221
    %v1223 = vsel %vm413, %v1222, %v1218
    %v1225 = vsel %vm1187, %v1223, %v1214
    %v1226 = vld [vmem:[%s12] sm:$0xff]
    %v1227 = vld [vmem:[%s12 + $0x8] sm:$0xff]
    %v1228 = vld [vmem:[%s12 + $0x10] sm:$0xff]
    %v1229 = vld [vmem:[%s12 + $0x18] sm:$0xff]
    %v1230 = vld [vmem:[%s13] sm:$0x1]
    %v1232 = vlaneseq
    %v1233 = vshrl.u32 %v1232, 7
    %v1234 = vsub.s32 0, %v1233
    %v1235 = vrot.slane %v1230, %v1234
    %1238 = vrot.lane.b32.xlu0 %v1192, 32
    %v1239 = vpop.permute.xlu0 %1238
    %v1240 = vsel %vm115, %v1239, 0
    %1242 = vmatprep.subr.mxu0 0.0
    %1243 = vmatpush1.msra.mxu0 %v1226
    %1244 = vmatprep.subr.mxu0 0.0
    %1245 = vmatpush1.msra.mxu0 %v1227
    %1246 = vmatprep.subr.mxu0 0.0
    %1247 = vmatpush1.msra.mxu0 %v1228
    %1248 = vmatprep.subr.mxu0 0.0
    %1249 = vmatpush1.msra.mxu0 %v1229
    %1250 = vmatprep.subr.mxu0 0.0
    %1251 = vmatpush1.msra.mxu0 0.0
    %1252 = vmatprep.subr.mxu0 0.0
    %1253 = vmatpush1.msra.mxu0 0.0
    %1254 = vmatprep.subr.mxu0 0.0
    %1255 = vmatpush1.msra.mxu0 0.0
    %1256 = vmatprep.subr.mxu0 0.0
    %1257 = vmatpush1.msra.mxu0 0.0
    %1258 = vmatprep.subr.mxu0 0.0
    %1259 = vmatpush1.msra.mxu0 0.0
    %1260 = vmatprep.subr.mxu0 0.0
    %1261 = vmatpush1.msra.mxu0 0.0
    %1262 = vmatprep.subr.mxu0 0.0
    %1263 = vmatpush1.msra.mxu0 0.0
    %1264 = vmatprep.subr.mxu0 0.0
    %1265 = vmatpush1.msra.mxu0 0.0
    %1266 = vmatprep.subr.mxu0 0.0
    %1267 = vmatpush1.msra.mxu0 0.0
    %1268 = vmatprep.subr.mxu0 0.0
    %1269 = vmatpush1.msra.mxu0 0.0
    %1270 = vmatprep.subr.mxu0 0.0
    %1271 = vmatpush1.msra.mxu0 0.0
    %1272 = vmatprep.subr.mxu0 0.0
    %1273 = vmatpush1.msra.mxu0 0.0
    %1274 = vmatprep.subr.mxu0 0.0
    %1275 = vmatpush1.msra.mxu0 0.0
    %1276 = vmatprep.subr.mxu0 0.0
    %1277 = vmatpush1.msra.mxu0 0.0
    %1278 = vmatprep.subr.mxu0 0.0
    %1279 = vmatpush1.msra.mxu0 0.0
    %1280 = vmatprep.subr.mxu0 0.0
    %1281 = vmatpush1.msra.mxu0 0.0
    %1282 = vmatprep.subr.mxu0 0.0
    %1283 = vmatpush1.msra.mxu0 0.0
    %1284 = vmatprep.subr.mxu0 0.0
    %1285 = vmatpush1.msra.mxu0 0.0
    %1286 = vmatprep.subr.mxu0 0.0
    %1287 = vmatpush1.msra.mxu0 0.0
    %1288 = vmatprep.subr.mxu0 0.0
    %1289 = vmatpush1.msra.mxu0 0.0
    %1290 = vmatprep.subr.mxu0 0.0
    %1291 = vmatpush1.msra.mxu0 0.0
    %1292 = vmatprep.subr.mxu0 0.0
    %1293 = vmatpush1.msra.mxu0 0.0
    %1294 = vmatprep.subr.mxu0 0.0
    %1295 = vmatpush1.msra.mxu0 0.0
    %1296 = vmatprep.subr.mxu0 0.0
    %1297 = vmatpush1.msra.mxu0 0.0
    %1298 = vmatprep.subr.mxu0 0.0
    %1299 = vmatpush1.msra.mxu0 0.0
    %1300 = vmatprep.subr.mxu0 0.0
    %1301 = vmatpush1.msra.mxu0 0.0
    %1302 = vmatprep.subr.mxu0 0.0
    %1303 = vmatpush1.msra.mxu0 0.0
    %1304 = vmatprep.subr.mxu0 0.0
    %1305 = vmatpush1.msra.mxu0 0.0
    %1306 = vmatprep.mubr.f32.mxu0 0.0
    %1307 = vmatmul.mubr.f32.gmra.mrb[0].mxu0 %v1240
    %v1308 = vpop.f32.mrb[0].mxu0
    %v1309 = vadd.f32 %v1235, %v1308
    %v1310 = vpop.f32.mrb[0].mxu0
    %1311 = vdwg.mxu0
    %v1312 = vmax.f32 %v1309, 0.0
    %v1313 = vld [vmem:[%s14] sm:$0xff]
    %v1314 = vld [vmem:[%s14 + $0x8] sm:$0xff]
    %v1315 = vld [vmem:[%s14 + $0x10] sm:$0xff]
    %v1316 = vld [vmem:[%s14 + $0x18] sm:$0xff]
    %v1317 = vld [vmem:[%s14 + $0x20] sm:$0xff]
    %v1318 = vld [vmem:[%s14 + $0x28] sm:$0xff]
    %v1319 = vld [vmem:[%s14 + $0x30] sm:$0xff]
    %v1320 = vld [vmem:[%s14 + $0x38] sm:$0xff]
    %v1321 = vld [vmem:[%s14 + $0x40] sm:$0xff]
    %v1322 = vld [vmem:[%s14 + $0x48] sm:$0xff]
    %v1323 = vld [vmem:[%s14 + $0x50] sm:$0xff]
    %v1324 = vld [vmem:[%s14 + $0x58] sm:$0xff]
    %v1325 = vld [vmem:[%s14 + $0x60] sm:$0xff]
    %v1326 = vld [vmem:[%s14 + $0x68] sm:$0xff]
    %v1327 = vld [vmem:[%s14 + $0x70] sm:$0xff]
    %v1328 = vld [vmem:[%s14 + $0x78] sm:$0xff]
    %v1329 = vld [vmem:[%s15] sm:$0x1]
    %v1331 = vlaneseq
    %v1332 = vshrl.u32 %v1331, 7
    %v1333 = vsub.s32 0, %v1332
    %v1334 = vrot.slane %v1329, %v1333
    %1336 = vmatprep.subr.mxu0 0.0
    %1337 = vmatpush1.msra.mxu0 %v1313
    %1338 = vmatprep.subr.mxu0 0.0
    %1339 = vmatpush1.msra.mxu0 %v1314
    %1340 = vmatprep.subr.mxu0 0.0
    %1341 = vmatpush1.msra.mxu0 %v1315
    %1342 = vmatprep.subr.mxu0 0.0
    %1343 = vmatpush1.msra.mxu0 %v1316
    %1344 = vmatprep.subr.mxu0 0.0
    %1345 = vmatpush1.msra.mxu0 %v1317
    %1346 = vmatprep.subr.mxu0 0.0
    %1347 = vmatpush1.msra.mxu0 %v1318
    %1348 = vmatprep.subr.mxu0 0.0
    %1349 = vmatpush1.msra.mxu0 %v1319
    %1350 = vmatprep.subr.mxu0 0.0
    %1351 = vmatpush1.msra.mxu0 %v1320
    %1352 = vmatprep.subr.mxu0 0.0
    %1353 = vmatpush1.msra.mxu0 %v1321
    %1354 = vmatprep.subr.mxu0 0.0
    %1355 = vmatpush1.msra.mxu0 %v1322
    %1356 = vmatprep.subr.mxu0 0.0
    %1357 = vmatpush1.msra.mxu0 %v1323
    %1358 = vmatprep.subr.mxu0 0.0
    %1359 = vmatpush1.msra.mxu0 %v1324
    %1360 = vmatprep.subr.mxu0 0.0
    %1361 = vmatpush1.msra.mxu0 %v1325
    %1362 = vmatprep.subr.mxu0 0.0
    %1363 = vmatpush1.msra.mxu0 %v1326
    %1364 = vmatprep.subr.mxu0 0.0
    %1365 = vmatpush1.msra.mxu0 %v1327
    %1366 = vmatprep.subr.mxu0 0.0
    %1367 = vmatpush1.msra.mxu0 %v1328
    %1368 = vmatprep.subr.mxu0 0.0
    %1369 = vmatpush1.msra.mxu0 0.0
    %1370 = vmatprep.subr.mxu0 0.0
    %1371 = vmatpush1.msra.mxu0 0.0
    %1372 = vmatprep.subr.mxu0 0.0
    %1373 = vmatpush1.msra.mxu0 0.0
    %1374 = vmatprep.subr.mxu0 0.0
    %1375 = vmatpush1.msra.mxu0 0.0
    %1376 = vmatprep.subr.mxu0 0.0
    %1377 = vmatpush1.msra.mxu0 0.0
    %1378 = vmatprep.subr.mxu0 0.0
    %1379 = vmatpush1.msra.mxu0 0.0
    %1380 = vmatprep.subr.mxu0 0.0
    %1381 = vmatpush1.msra.mxu0 0.0
    %1382 = vmatprep.subr.mxu0 0.0
    %1383 = vmatpush1.msra.mxu0 0.0
    %1384 = vmatprep.subr.mxu0 0.0
    %1385 = vmatpush1.msra.mxu0 0.0
    %1386 = vmatprep.subr.mxu0 0.0
    %1387 = vmatpush1.msra.mxu0 0.0
    %1388 = vmatprep.subr.mxu0 0.0
    %1389 = vmatpush1.msra.mxu0 0.0
    %1390 = vmatprep.subr.mxu0 0.0
    %1391 = vmatpush1.msra.mxu0 0.0
    %1392 = vmatprep.subr.mxu0 0.0
    %1393 = vmatpush1.msra.mxu0 0.0
    %1394 = vmatprep.subr.mxu0 0.0
    %1395 = vmatpush1.msra.mxu0 0.0
    %1396 = vmatprep.subr.mxu0 0.0
    %1397 = vmatpush1.msra.mxu0 0.0
    %1398 = vmatprep.subr.mxu0 0.0
    %1399 = vmatpush1.msra.mxu0 0.0
    %1400 = vmatprep.mubr.f32.mxu0 0.0
    %1401 = vmatmul.mubr.f32.gmra.mrb[0].mxu0 %v1312
    %v1402 = vpop.f32.mrb[0].mxu0
    %v1403 = vadd.f32 %v1334, %v1402
    %v1404 = vpop.f32.mrb[0].mxu0
    %1405 = vdwg.mxu0
    %1408 = vrot.lane.b32.xlu0 %v1403, 32
    %v1409 = vpop.permute.xlu0 %1408
    %1412 = vrot.lane.b32.xlu0 %v1225, 8
    %v1413 = vpop.permute.xlu0 %1412
    %v1415 = vsel %vm115, %v1239, %v1409
    %v1416 = vsel %vm924, %v1409, %v1413
    %vm1417 = vcmask 130048
    %v1418 = vsel %vm1417, %v1416, 0.0
    %v1421 = vcombine.low %v1415, %v1418
    %v1423 = vunpack.c.l.s4 1983009808
    %v1424 = vunpack.c.0.s8 %v1423
    %v1425 = vlaneseq
    %v1426 = vshrl.u32 %v1425, 7
    %v1427 = vsub.s32 %v1424, %v1426
    %v1428 = vrot.slane %v1421, %v1427
    %1430 = vst [vmem:[#allocation7] sm:$0xf] %v1428
    // Predicated region
    $region74: #{tpu_custom_call.1} parent=1 // pred_check
      _
    $region75: #{tpu_custom_call.1} parent=1 // pred_check_branch
      %1432 = sbr.rel (0) target = $region77
    $region76: #{tpu_custom_call.1} parent=1 // pred_region
      %s1434 = ssub.s32 64, 64
      %1435 = vsyncadd [#allocation4], %s1434
      %s1437 = sshll.u32 [#allocation7], 4
      %s1438 = int_to_ptr.vmem [resolvable:$true] %s1437
      %1440 = dma.vmem_to_hbm [thread:$0]  %s1438, 64, %s16, [#allocation4]
    $region77: #{tpu_custom_call.1} parent=1 // pred_fallthru
      _
    // Predicated region
    $region78: #{tpu_custom_call.1} parent=1 // pred_check
      _
    $region79: #{tpu_custom_call.1} parent=1 // pred_check_branch
      %1442 = sbr.rel (0) target = $region81
    $region80: #{tpu_custom_call.1} parent=1 // pred_region
      %1443 = dma.done [#allocation4], 64
    $region81: #{tpu_custom_call.1} parent=1 // pred_fallthru
      _
    %1444 = vsyncpa [#allocation3], 1
    %1445 = vsyncpa [#allocation4], 1
    %1446 = vsyncpa [#allocation5], 1

</llo_original>
